<compile_context>
chip_gen: v5e
topology: v5e:2x2
jax: 0.10.0
libtpu: 0.0.40
codegen_flags: <defaults>
</compile_context>

<pallas_src>
import functools
import math

import jax
import jax.numpy as jnp
from jax import lax
from jax.experimental import pallas as pl
from jax.experimental.pallas import tpu as pltpu


def _round_up(x, m):
    return (x + m - 1) // m * m


# ---------------------------------------------------------------------------
# Fused depth-head kernel: one grid step == one image, everything in VMEM.
#
# Activation layout: (C, L_alloc) with channels in sublanes and the flattened
# padded pixel index in lanes; lane M0 + h*W_pad + w holds pixel (h, w).
# Margins [0, M0) / [M0+L, L_alloc) and pad columns w in [W, W_pad) stay zero,
# implementing conv 'SAME' zero padding.  A 3x3 tap (dh, dw) is a lane offset
# of (dh-1)*W_pad + (dw-1).
# ---------------------------------------------------------------------------
def _depth_head_kernel(x_ref, w1_ref, b1_ref, w2_ref, b2_ref, w3_ref, b3_ref,
                       o_ref, a1_ref, a2_ref, col_ref, *,
                       W, W_pad, L, M0, L_alloc, C):
    offs = [(dh - 1) * W_pad + (dw - 1) for dh in range(3) for dw in range(3)]

    # In-kernel pad-column mask: (lane % W_pad) < W, computed rem-free with
    # exact float arithmetic (lane < 2^24, +0.5 keeps floor away from edges).
    lane = jax.lax.broadcasted_iota(jnp.int32, (1, L), 1).astype(jnp.float32)
    row = jnp.floor((lane + 0.5) * (1.0 / W_pad))
    col_mask = (lane - row * W_pad) < W                # (1, L) bool

    def build_im2col(read_slice):
        # 9 shifted (C, L) copies -> (9*C, L) im2col tile in VMEM (bf16).
        for k, off in enumerate(offs):
            col_ref[k * C:(k + 1) * C, :] = read_slice(M0 + off)

    def conv_relu(w_ref, b_ref, dst_ref):
        # Single K=9*C matmul on the MXU, f32 accumulate, lane-dense output.
        y = jnp.dot(w_ref[...], col_ref[...],
                    preferred_element_type=jnp.float32)         # (C, L)
        y = jnp.maximum(y + b_ref[...], 0.0)
        y = jnp.where(col_mask, y, 0.0)                # keep pad columns == 0
        # Zero vertical-tap margins + store body; all widths are 128-multiples.
        dst_ref[:, 0:M0] = jnp.zeros((C, M0), jnp.bfloat16)
        dst_ref[:, M0 + L:L_alloc] = jnp.zeros((C, L_alloc - M0 - L),
                                               jnp.bfloat16)
        dst_ref[:, M0:M0 + L] = y.astype(jnp.bfloat16)

    # layer 1: 3 (padded to C) -> C, ReLU
    build_im2col(lambda s: x_ref[0, :, s:s + L])
    conv_relu(w1_ref, b1_ref, a1_ref)
    # layer 2: C -> C, ReLU
    build_im2col(lambda s: a1_ref[:, s:s + L])
    conv_relu(w2_ref, b2_ref, a2_ref)
    # layer 3: C -> 1, sigmoid (row-padded lhs; lane-dense (1, L) result)
    build_im2col(lambda s: a2_ref[:, s:s + L])
    y3 = jnp.dot(w3_ref[...], col_ref[...],
                 preferred_element_type=jnp.float32)             # (8, L)
    depth = jax.nn.sigmoid(y3[0:1, :] + b3_ref[...])             # (1, L)
    o_ref[0, :, :] = depth


# ---------------------------------------------------------------------------
# Wrapper: layout glue only (channel/column padding + flatten, weight packing,
# final un-pad reshape).  No im2col in HBM.
# ---------------------------------------------------------------------------
def simple_depth_net(rgb_nchw, params):
    N, C_in, H, W = rgb_nchw.shape
    C = params["w1"].shape[0]                # mid channels; also tap-channel pad
    assert C % 8 == 0 and C_in <= C

    # W_pad >= W+2 and H*W_pad a multiple of 128 -> lane-dense, unmasked stores.
    step = 128 // math.gcd(H, 128)
    W_pad = _round_up(W + 2, step)
    L = H * W_pad
    M0 = _round_up(W_pad + 1, 128)           # body start (128-lane aligned)
    L_alloc = _round_up(M0 + L + W_pad + 1, 128)

    # Input: (N, C_in, H, W) -> (N, C, L_alloc) bf16; channel pad rows, pad
    # columns and margins are zero (they ARE the conv zero padding).
    x = jnp.pad(rgb_nchw.astype(jnp.float32),
                ((0, 0), (0, C - C_in), (0, 0), (0, W_pad - W)))
    x = x.reshape(N, C, L)
    x_flat = jnp.zeros((N, C, L_alloc), jnp.bfloat16)
    x_flat = x_flat.at[:, :, M0:M0 + L].set(x.astype(jnp.bfloat16))

    def pack_w(w):
        # (Cout, Cin, 3, 3) -> (Cout, 9*C) bf16; column index = tap*C + channel.
        cout, cin = w.shape[0], w.shape[1]
        t = jnp.transpose(w, (2, 3, 1, 0)).reshape(9, cin, cout)
        t = jnp.pad(t, ((0, 0), (0, C - cin), (0, 0)))
        return jnp.transpose(t.reshape(9 * C, cout), (1, 0)).astype(jnp.bfloat16)

    w1 = pack_w(params["w1"])                              # (C, 9C)
    w2 = pack_w(params["w2"])                              # (C, 9C)
    w3 = jnp.pad(pack_w(params["w3"]), ((0, 7), (0, 0)))   # (8, 9C), rows 1..7 zero
    b1 = params["b1"].reshape(C, 1).astype(jnp.float32)
    b2 = params["b2"].reshape(C, 1).astype(jnp.float32)
    b3 = params["b3"].reshape(1, 1).astype(jnp.float32)

    kernel = functools.partial(_depth_head_kernel, W=W, W_pad=W_pad, L=L,
                               M0=M0, L_alloc=L_alloc, C=C)
    const2 = lambda i: (0, 0)

    out = pl.pallas_call(
        kernel,
        out_shape=jax.ShapeDtypeStruct((N, 1, L), jnp.float32),
        grid=(N,),
        in_specs=[
            pl.BlockSpec((1, C, L_alloc), lambda i: (i, 0, 0)),
            pl.BlockSpec((C, 9 * C), const2),          # resident weights
            pl.BlockSpec((C, 1), const2),
            pl.BlockSpec((C, 9 * C), const2),
            pl.BlockSpec((C, 1), const2),
            pl.BlockSpec((8, 9 * C), const2),
            pl.BlockSpec((1, 1), const2),
        ],
        out_specs=pl.BlockSpec((1, 1, L), lambda i: (i, 0, 0)),
        scratch_shapes=[pltpu.VMEM((C, L_alloc), jnp.bfloat16),   # a1
                        pltpu.VMEM((C, L_alloc), jnp.bfloat16),   # a2
                        pltpu.VMEM((9 * C, L), jnp.bfloat16)],    # im2col
        compiler_params=pltpu.CompilerParams(
            dimension_semantics=("parallel",),
            vmem_limit_bytes=32 * 1024 * 1024),
    )(x_flat, w1, b1, w2, b2, w3, b3)

    depth = out[:, 0, :].reshape(N, H, W_pad)[:, :, :W]    # drop pad columns
    return depth[:, None, :, :]                             # (N, 1, H, W)


# ---------------------------------------------------------------------------
# Pure-JAX reference (for numerical validation) and parameter init.
# ---------------------------------------------------------------------------
def _depth_head_reference(rgb_nchw, params):
    x = jnp.transpose(rgb_nchw, (0, 2, 3, 1))

    def conv(x, w, b):
        return lax.conv_general_dilated(
            x, jnp.transpose(w, (2, 3, 1, 0)), (1, 1), "SAME",
            dimension_numbers=("NHWC", "HWIO", "NHWC")) + b

    h = jax.nn.relu(conv(x, params["w1"], params["b1"]))
    h = jax.nn.relu(conv(h, params["w2"], params["b2"]))
    h = jax.nn.sigmoid(conv(h, params["w3"], params["b3"]))
    return jnp.transpose(h, (0, 3, 1, 2))


def init_params(key, c_in=3, c_mid=16):
    ks = jax.random.split(key, 6)
    scale = 0.1
    return {
        "w1": scale * jax.random.normal(ks[0], (c_mid, c_in, 3, 3), jnp.float32),
        "b1": scale * jax.random.normal(ks[1], (c_mid,), jnp.float32),
        "w2": scale * jax.random.normal(ks[2], (c_mid, c_mid, 3, 3), jnp.float32),
        "b2": scale * jax.random.normal(ks[3], (c_mid,), jnp.float32),
        "w3": scale * jax.random.normal(ks[4], (1, c_mid, 3, 3), jnp.float32),
        "b3": scale * jax.random.normal(ks[5], (1,), jnp.float32),
    }


if __name__ == "__main__":
    key = jax.random.PRNGKey(0)
    k_x, k_p = jax.random.split(key)

    N, C, H, W = 2, 3, 16, 16
    rgb = jax.random.normal(k_x, (N, C, H, W), jnp.float32)
    params = init_params(k_p, c_in=C, c_mid=16)

    inv_depth = jax.jit(simple_depth_net)(rgb, params)
    jax.block_until_ready(inv_depth)

    assert inv_depth.shape == (N, 1, H, W)
    assert bool(jnp.all(jnp.isfinite(inv_depth)))

    ref = _depth_head_reference(rgb, params)
    err = float(jnp.max(jnp.abs(inv_depth - ref)))
    assert err < 5e-2, f"max abs error vs reference too large: {err}"
    print("KERNEL_OK")
</pallas_src>

<mosaic_0001>
module attributes {stable_mosaic.version = 11 : i64} {
  func.func @_depth_head_kernel(%arg0: i32, %arg1: memref<1x16x640xbf16, #tpu.memory_space<vmem>>, %arg2: memref<16x144xbf16, #tpu.memory_space<vmem>>, %arg3: memref<16x1xf32, #tpu.memory_space<vmem>>, %arg4: memref<16x144xbf16, #tpu.memory_space<vmem>>, %arg5: memref<16x1xf32, #tpu.memory_space<vmem>>, %arg6: memref<8x144xbf16, #tpu.memory_space<vmem>>, %arg7: memref<1x1xf32, #tpu.memory_space<vmem>>, %arg8: memref<1x1x384xf32, #tpu.memory_space<vmem>>, %arg9: memref<16x640xbf16, #tpu.memory_space<vmem>>, %arg10: memref<16x640xbf16, #tpu.memory_space<vmem>>, %arg11: memref<144x384xbf16, #tpu.memory_space<vmem>>) attributes {dimension_semantics = [#tpu.dimension_semantics<parallel>], iteration_bounds = array<i64: 2>, scalar_prefetch = 0 : i64, scratch_operands = 3 : i64, tpu.core_type = #tpu.core_type<tc>, window_params = [{transform_indices = @transform_0, window_bounds = array<i64: 1, 16, 640>}, {pipeline_mode = #tpu.pipeline_mode<synchronous>, transform_indices = @transform_1, window_bounds = array<i64: 16, 144>}, {pipeline_mode = #tpu.pipeline_mode<synchronous>, transform_indices = @transform_2, window_bounds = array<i64: 16, 1>}, {pipeline_mode = #tpu.pipeline_mode<synchronous>, transform_indices = @transform_3, window_bounds = array<i64: 16, 144>}, {pipeline_mode = #tpu.pipeline_mode<synchronous>, transform_indices = @transform_4, window_bounds = array<i64: 16, 1>}, {pipeline_mode = #tpu.pipeline_mode<synchronous>, transform_indices = @transform_5, window_bounds = array<i64: 8, 144>}, {pipeline_mode = #tpu.pipeline_mode<synchronous>, transform_indices = @transform_6, window_bounds = array<i64: 1, 1>}, {transform_indices = @transform_7, window_bounds = array<i64: 1, 1, 384>}]} {
    %0 = tpu.iota {dimensions = array<i32: 1>} : vector<1x384xi32>
    %1 = arith.sitofp %0 : vector<1x384xi32> to vector<1x384xf32>
    %cst = arith.constant 5.000000e-01 : f32
    %2 = vector.broadcast %cst : f32 to vector<1x384xf32>
    %3 = arith.addf %1, %2 : vector<1x384xf32>
    %cst_0 = arith.constant 0.0416666679 : f32
    %4 = vector.broadcast %cst_0 : f32 to vector<1x384xf32>
    %5 = arith.mulf %3, %4 : vector<1x384xf32>
    %6 = math.floor %5 : vector<1x384xf32>
    %cst_1 = arith.constant 2.400000e+01 : f32
    %7 = vector.broadcast %cst_1 : f32 to vector<1x384xf32>
    %8 = arith.mulf %6, %7 : vector<1x384xf32>
    %9 = arith.subf %1, %8 : vector<1x384xf32>
    %cst_2 = arith.constant 1.600000e+01 : f32
    %10 = vector.broadcast %cst_2 : f32 to vector<1x384xf32>
    %11 = arith.cmpf olt, %9, %10 : vector<1x384xf32>
    %c0 = arith.constant 0 : index
    %c0_3 = arith.constant 0 : index
    %c103 = arith.constant 103 : index
    %12 = vector.load %arg1[%c0, %c0_3, %c103] : memref<1x16x640xbf16, #tpu.memory_space<vmem>>, vector<1x16x384xbf16>
    %13 = vector.shape_cast %12 : vector<1x16x384xbf16> to vector<16x384xbf16>
    %c0_4 = arith.constant 0 : index
    %c0_5 = arith.constant 0 : index
    %14 = vector.load %arg11[%c0_4, %c0_5] : memref<144x384xbf16, #tpu.memory_space<vmem>>, vector<16x384xbf16>
    tpu.vector_store %arg11[%c0_4, %c0_5], %13 {strides = array<i32>} : memref<144x384xbf16, #tpu.memory_space<vmem>>, vector<16x384xbf16>,
    %c0_6 = arith.constant 0 : index
    %c0_7 = arith.constant 0 : index
    %c104 = arith.constant 104 : index
    %15 = vector.load %arg1[%c0_6, %c0_7, %c104] : memref<1x16x640xbf16, #tpu.memory_space<vmem>>, vector<1x16x384xbf16>
    %16 = vector.shape_cast %15 : vector<1x16x384xbf16> to vector<16x384xbf16>
    %c16 = arith.constant 16 : index
    %c0_8 = arith.constant 0 : index
    %17 = vector.load %arg11[%c16, %c0_8] : memref<144x384xbf16, #tpu.memory_space<vmem>>, vector<16x384xbf16>
    tpu.vector_store %arg11[%c16, %c0_8], %16 {strides = array<i32>} : memref<144x384xbf16, #tpu.memory_space<vmem>>, vector<16x384xbf16>,
    %c0_9 = arith.constant 0 : index
    %c0_10 = arith.constant 0 : index
    %c105 = arith.constant 105 : index
    %18 = vector.load %arg1[%c0_9, %c0_10, %c105] : memref<1x16x640xbf16, #tpu.memory_space<vmem>>, vector<1x16x384xbf16>
    %19 = vector.shape_cast %18 : vector<1x16x384xbf16> to vector<16x384xbf16>
    %c32 = arith.constant 32 : index
    %c0_11 = arith.constant 0 : index
    %20 = vector.load %arg11[%c32, %c0_11] : memref<144x384xbf16, #tpu.memory_space<vmem>>, vector<16x384xbf16>
    tpu.vector_store %arg11[%c32, %c0_11], %19 {strides = array<i32>} : memref<144x384xbf16, #tpu.memory_space<vmem>>, vector<16x384xbf16>,
    %c0_12 = arith.constant 0 : index
    %c0_13 = arith.constant 0 : index
    %c127 = arith.constant 127 : index
    %21 = vector.load %arg1[%c0_12, %c0_13, %c127] : memref<1x16x640xbf16, #tpu.memory_space<vmem>>, vector<1x16x384xbf16>
    %22 = vector.shape_cast %21 : vector<1x16x384xbf16> to vector<16x384xbf16>
    %c48 = arith.constant 48 : index
    %c0_14 = arith.constant 0 : index
    %23 = vector.load %arg11[%c48, %c0_14] : memref<144x384xbf16, #tpu.memory_space<vmem>>, vector<16x384xbf16>
    tpu.vector_store %arg11[%c48, %c0_14], %22 {strides = array<i32>} : memref<144x384xbf16, #tpu.memory_space<vmem>>, vector<16x384xbf16>,
    %c0_15 = arith.constant 0 : index
    %c0_16 = arith.constant 0 : index
    %c128 = arith.constant 128 : index
    %24 = vector.load %arg1[%c0_15, %c0_16, %c128] : memref<1x16x640xbf16, #tpu.memory_space<vmem>>, vector<1x16x384xbf16>
    %25 = vector.shape_cast %24 : vector<1x16x384xbf16> to vector<16x384xbf16>
    %c64 = arith.constant 64 : index
    %c0_17 = arith.constant 0 : index
    %26 = vector.load %arg11[%c64, %c0_17] : memref<144x384xbf16, #tpu.memory_space<vmem>>, vector<16x384xbf16>
    tpu.vector_store %arg11[%c64, %c0_17], %25 {strides = array<i32>} : memref<144x384xbf16, #tpu.memory_space<vmem>>, vector<16x384xbf16>,
    %c0_18 = arith.constant 0 : index
    %c0_19 = arith.constant 0 : index
    %c129 = arith.constant 129 : index
    %27 = vector.load %arg1[%c0_18, %c0_19, %c129] : memref<1x16x640xbf16, #tpu.memory_space<vmem>>, vector<1x16x384xbf16>
    %28 = vector.shape_cast %27 : vector<1x16x384xbf16> to vector<16x384xbf16>
    %c80 = arith.constant 80 : index
    %c0_20 = arith.constant 0 : index
    %29 = vector.load %arg11[%c80, %c0_20] : memref<144x384xbf16, #tpu.memory_space<vmem>>, vector<16x384xbf16>
    tpu.vector_store %arg11[%c80, %c0_20], %28 {strides = array<i32>} : memref<144x384xbf16, #tpu.memory_space<vmem>>, vector<16x384xbf16>,
    %c0_21 = arith.constant 0 : index
    %c0_22 = arith.constant 0 : index
    %c151 = arith.constant 151 : index
    %30 = vector.load %arg1[%c0_21, %c0_22, %c151] : memref<1x16x640xbf16, #tpu.memory_space<vmem>>, vector<1x16x384xbf16>
    %31 = vector.shape_cast %30 : vector<1x16x384xbf16> to vector<16x384xbf16>
    %c96 = arith.constant 96 : index
    %c0_23 = arith.constant 0 : index
    %32 = vector.load %arg11[%c96, %c0_23] : memref<144x384xbf16, #tpu.memory_space<vmem>>, vector<16x384xbf16>
    tpu.vector_store %arg11[%c96, %c0_23], %31 {strides = array<i32>} : memref<144x384xbf16, #tpu.memory_space<vmem>>, vector<16x384xbf16>,
    %c0_24 = arith.constant 0 : index
    %c0_25 = arith.constant 0 : index
    %c152 = arith.constant 152 : index
    %33 = vector.load %arg1[%c0_24, %c0_25, %c152] : memref<1x16x640xbf16, #tpu.memory_space<vmem>>, vector<1x16x384xbf16>
    %34 = vector.shape_cast %33 : vector<1x16x384xbf16> to vector<16x384xbf16>
    %c112 = arith.constant 112 : index
    %c0_26 = arith.constant 0 : index
    %35 = vector.load %arg11[%c112, %c0_26] : memref<144x384xbf16, #tpu.memory_space<vmem>>, vector<16x384xbf16>
    tpu.vector_store %arg11[%c112, %c0_26], %34 {strides = array<i32>} : memref<144x384xbf16, #tpu.memory_space<vmem>>, vector<16x384xbf16>,
    %c0_27 = arith.constant 0 : index
    %c0_28 = arith.constant 0 : index
    %c153 = arith.constant 153 : index
    %36 = vector.load %arg1[%c0_27, %c0_28, %c153] : memref<1x16x640xbf16, #tpu.memory_space<vmem>>, vector<1x16x384xbf16>
    %37 = vector.shape_cast %36 : vector<1x16x384xbf16> to vector<16x384xbf16>
    %c128_29 = arith.constant 128 : index
    %c0_30 = arith.constant 0 : index
    %38 = vector.load %arg11[%c128_29, %c0_30] : memref<144x384xbf16, #tpu.memory_space<vmem>>, vector<16x384xbf16>
    tpu.vector_store %arg11[%c128_29, %c0_30], %37 {strides = array<i32>} : memref<144x384xbf16, #tpu.memory_space<vmem>>, vector<16x384xbf16>,
    %c0_31 = arith.constant 0 : index
    %c0_32 = arith.constant 0 : index
    %39 = vector.load %arg2[%c0_31, %c0_32] : memref<16x144xbf16, #tpu.memory_space<vmem>>, vector<16x144xbf16>
    %c0_33 = arith.constant 0 : index
    %c0_34 = arith.constant 0 : index
    %40 = vector.load %arg11[%c0_33, %c0_34] : memref<144x384xbf16, #tpu.memory_space<vmem>>, vector<144x384xbf16>
    %cst_35 = arith.constant dense<0.000000e+00> : vector<16x384xf32>
    %41 = tpu.matmul %39, %40, %cst_35 {dimension_numbers = #tpu.dot_dimension_numbers<[1], [0], [0], [1], [0, 0, 1, 1], [], []>} : vector<16x144xbf16>, vector<144x384xbf16>, vector<16x384xf32> -> vector<16x384xf32>
    %c0_36 = arith.constant 0 : index
    %c0_37 = arith.constant 0 : index
    %42 = vector.load %arg3[%c0_36, %c0_37] : memref<16x1xf32, #tpu.memory_space<vmem>>, vector<16x1xf32>
    %43 = vector.broadcast %42 : vector<16x1xf32> to vector<16x384xf32>
    %44 = arith.addf %41, %43 : vector<16x384xf32>
    %cst_38 = arith.constant 0.000000e+00 : f32
    %45 = vector.broadcast %cst_38 : f32 to vector<16x384xf32>
    %46 = arith.maximumf %44, %45 : vector<16x384xf32>
    %cst_39 = arith.constant 0.000000e+00 : f32
    %47 = vector.shape_cast %11 : vector<1x384xi1> to vector<1x384xi1>
    %48 = vector.broadcast %47 : vector<1x384xi1> to vector<16x384xi1>
    %49 = vector.broadcast %cst_39 : f32 to vector<16x384xf32>
    %50 = arith.select %48, %46, %49 : vector<16x384xi1>, vector<16x384xf32>
    %cst_40 = arith.constant 0.000000e+00 : bf16
    %51 = vector.broadcast %cst_40 : bf16 to vector<16x128xbf16>
    %c0_41 = arith.constant 0 : index
    %c0_42 = arith.constant 0 : index
    %52 = vector.load %arg9[%c0_41, %c0_42] : memref<16x640xbf16, #tpu.memory_space<vmem>>, vector<16x128xbf16>
    tpu.vector_store %arg9[%c0_41, %c0_42], %51 {strides = array<i32>} : memref<16x640xbf16, #tpu.memory_space<vmem>>, vector<16x128xbf16>,
    %cst_43 = arith.constant 0.000000e+00 : bf16
    %53 = vector.broadcast %cst_43 : bf16 to vector<16x128xbf16>
    %c0_44 = arith.constant 0 : index
    %c512 = arith.constant 512 : index
    %54 = vector.load %arg9[%c0_44, %c512] : memref<16x640xbf16, #tpu.memory_space<vmem>>, vector<16x128xbf16>
    tpu.vector_store %arg9[%c0_44, %c512], %53 {strides = array<i32>} : memref<16x640xbf16, #tpu.memory_space<vmem>>, vector<16x128xbf16>,
    %55 = arith.truncf %50 : vector<16x384xf32> to vector<16x384xbf16>
    %c0_45 = arith.constant 0 : index
    %c128_46 = arith.constant 128 : index
    %56 = vector.load %arg9[%c0_45, %c128_46] : memref<16x640xbf16, #tpu.memory_space<vmem>>, vector<16x384xbf16>
    tpu.vector_store %arg9[%c0_45, %c128_46], %55 {strides = array<i32>} : memref<16x640xbf16, #tpu.memory_space<vmem>>, vector<16x384xbf16>,
    %c0_47 = arith.constant 0 : index
    %c103_48 = arith.constant 103 : index
    %57 = vector.load %arg9[%c0_47, %c103_48] : memref<16x640xbf16, #tpu.memory_space<vmem>>, vector<16x384xbf16>
    %c0_49 = arith.constant 0 : index
    %c0_50 = arith.constant 0 : index
    %58 = vector.load %arg11[%c0_49, %c0_50] : memref<144x384xbf16, #tpu.memory_space<vmem>>, vector<16x384xbf16>
    tpu.vector_store %arg11[%c0_49, %c0_50], %57 {strides = array<i32>} : memref<144x384xbf16, #tpu.memory_space<vmem>>, vector<16x384xbf16>,
    %c0_51 = arith.constant 0 : index
    %c104_52 = arith.constant 104 : index
    %59 = vector.load %arg9[%c0_51, %c104_52] : memref<16x640xbf16, #tpu.memory_space<vmem>>, vector<16x384xbf16>
    %c16_53 = arith.constant 16 : index
    %c0_54 = arith.constant 0 : index
    %60 = vector.load %arg11[%c16_53, %c0_54] : memref<144x384xbf16, #tpu.memory_space<vmem>>, vector<16x384xbf16>
    tpu.vector_store %arg11[%c16_53, %c0_54], %59 {strides = array<i32>} : memref<144x384xbf16, #tpu.memory_space<vmem>>, vector<16x384xbf16>,
    %c0_55 = arith.constant 0 : index
    %c105_56 = arith.constant 105 : index
    %61 = vector.load %arg9[%c0_55, %c105_56] : memref<16x640xbf16, #tpu.memory_space<vmem>>, vector<16x384xbf16>
    %c32_57 = arith.constant 32 : index
    %c0_58 = arith.constant 0 : index
    %62 = vector.load %arg11[%c32_57, %c0_58] : memref<144x384xbf16, #tpu.memory_space<vmem>>, vector<16x384xbf16>
    tpu.vector_store %arg11[%c32_57, %c0_58], %61 {strides = array<i32>} : memref<144x384xbf16, #tpu.memory_space<vmem>>, vector<16x384xbf16>,
    %c0_59 = arith.constant 0 : index
    %c127_60 = arith.constant 127 : index
    %63 = vector.load %arg9[%c0_59, %c127_60] : memref<16x640xbf16, #tpu.memory_space<vmem>>, vector<16x384xbf16>
    %c48_61 = arith.constant 48 : index
    %c0_62 = arith.constant 0 : index
    %64 = vector.load %arg11[%c48_61, %c0_62] : memref<144x384xbf16, #tpu.memory_space<vmem>>, vector<16x384xbf16>
    tpu.vector_store %arg11[%c48_61, %c0_62], %63 {strides = array<i32>} : memref<144x384xbf16, #tpu.memory_space<vmem>>, vector<16x384xbf16>,
    %c0_63 = arith.constant 0 : index
    %c128_64 = arith.constant 128 : index
    %65 = vector.load %arg9[%c0_63, %c128_64] : memref<16x640xbf16, #tpu.memory_space<vmem>>, vector<16x384xbf16>
    %c64_65 = arith.constant 64 : index
    %c0_66 = arith.constant 0 : index
    %66 = vector.load %arg11[%c64_65, %c0_66] : memref<144x384xbf16, #tpu.memory_space<vmem>>, vector<16x384xbf16>
    tpu.vector_store %arg11[%c64_65, %c0_66], %65 {strides = array<i32>} : memref<144x384xbf16, #tpu.memory_space<vmem>>, vector<16x384xbf16>,
    %c0_67 = arith.constant 0 : index
    %c129_68 = arith.constant 129 : index
    %67 = vector.load %arg9[%c0_67, %c129_68] : memref<16x640xbf16, #tpu.memory_space<vmem>>, vector<16x384xbf16>
    %c80_69 = arith.constant 80 : index
    %c0_70 = arith.constant 0 : index
    %68 = vector.load %arg11[%c80_69, %c0_70] : memref<144x384xbf16, #tpu.memory_space<vmem>>, vector<16x384xbf16>
    tpu.vector_store %arg11[%c80_69, %c0_70], %67 {strides = array<i32>} : memref<144x384xbf16, #tpu.memory_space<vmem>>, vector<16x384xbf16>,
    %c0_71 = arith.constant 0 : index
    %c151_72 = arith.constant 151 : index
    %69 = vector.load %arg9[%c0_71, %c151_72] : memref<16x640xbf16, #tpu.memory_space<vmem>>, vector<16x384xbf16>
    %c96_73 = arith.constant 96 : index
    %c0_74 = arith.constant 0 : index
    %70 = vector.load %arg11[%c96_73, %c0_74] : memref<144x384xbf16, #tpu.memory_space<vmem>>, vector<16x384xbf16>
    tpu.vector_store %arg11[%c96_73, %c0_74], %69 {strides = array<i32>} : memref<144x384xbf16, #tpu.memory_space<vmem>>, vector<16x384xbf16>,
    %c0_75 = arith.constant 0 : index
    %c152_76 = arith.constant 152 : index
    %71 = vector.load %arg9[%c0_75, %c152_76] : memref<16x640xbf16, #tpu.memory_space<vmem>>, vector<16x384xbf16>
    %c112_77 = arith.constant 112 : index
    %c0_78 = arith.constant 0 : index
    %72 = vector.load %arg11[%c112_77, %c0_78] : memref<144x384xbf16, #tpu.memory_space<vmem>>, vector<16x384xbf16>
    tpu.vector_store %arg11[%c112_77, %c0_78], %71 {strides = array<i32>} : memref<144x384xbf16, #tpu.memory_space<vmem>>, vector<16x384xbf16>,
    %c0_79 = arith.constant 0 : index
    %c153_80 = arith.constant 153 : index
    %73 = vector.load %arg9[%c0_79, %c153_80] : memref<16x640xbf16, #tpu.memory_space<vmem>>, vector<16x384xbf16>
    %c128_81 = arith.constant 128 : index
    %c0_82 = arith.constant 0 : index
    %74 = vector.load %arg11[%c128_81, %c0_82] : memref<144x384xbf16, #tpu.memory_space<vmem>>, vector<16x384xbf16>
    tpu.vector_store %arg11[%c128_81, %c0_82], %73 {strides = array<i32>} : memref<144x384xbf16, #tpu.memory_space<vmem>>, vector<16x384xbf16>,
    %c0_83 = arith.constant 0 : index
    %c0_84 = arith.constant 0 : index
    %75 = vector.load %arg4[%c0_83, %c0_84] : memref<16x144xbf16, #tpu.memory_space<vmem>>, vector<16x144xbf16>
    %c0_85 = arith.constant 0 : index
    %c0_86 = arith.constant 0 : index
    %76 = vector.load %arg11[%c0_85, %c0_86] : memref<144x384xbf16, #tpu.memory_space<vmem>>, vector<144x384xbf16>
    %cst_87 = arith.constant dense<0.000000e+00> : vector<16x384xf32>
    %77 = tpu.matmul %75, %76, %cst_87 {dimension_numbers = #tpu.dot_dimension_numbers<[1], [0], [0], [1], [0, 0, 1, 1], [], []>} : vector<16x144xbf16>, vector<144x384xbf16>, vector<16x384xf32> -> vector<16x384xf32>
    %c0_88 = arith.constant 0 : index
    %c0_89 = arith.constant 0 : index
    %78 = vector.load %arg5[%c0_88, %c0_89] : memref<16x1xf32, #tpu.memory_space<vmem>>, vector<16x1xf32>
    %79 = vector.broadcast %78 : vector<16x1xf32> to vector<16x384xf32>
    %80 = arith.addf %77, %79 : vector<16x384xf32>
    %cst_90 = arith.constant 0.000000e+00 : f32
    %81 = vector.broadcast %cst_90 : f32 to vector<16x384xf32>
    %82 = arith.maximumf %80, %81 : vector<16x384xf32>
    %cst_91 = arith.constant 0.000000e+00 : f32
    %83 = vector.shape_cast %11 : vector<1x384xi1> to vector<1x384xi1>
    %84 = vector.broadcast %83 : vector<1x384xi1> to vector<16x384xi1>
    %85 = vector.broadcast %cst_91 : f32 to vector<16x384xf32>
    %86 = arith.select %84, %82, %85 : vector<16x384xi1>, vector<16x384xf32>
    %cst_92 = arith.constant 0.000000e+00 : bf16
    %87 = vector.broadcast %cst_92 : bf16 to vector<16x128xbf16>
    %c0_93 = arith.constant 0 : index
    %c0_94 = arith.constant 0 : index
    %88 = vector.load %arg10[%c0_93, %c0_94] : memref<16x640xbf16, #tpu.memory_space<vmem>>, vector<16x128xbf16>
    tpu.vector_store %arg10[%c0_93, %c0_94], %87 {strides = array<i32>} : memref<16x640xbf16, #tpu.memory_space<vmem>>, vector<16x128xbf16>,
    %cst_95 = arith.constant 0.000000e+00 : bf16
    %89 = vector.broadcast %cst_95 : bf16 to vector<16x128xbf16>
    %c0_96 = arith.constant 0 : index
    %c512_97 = arith.constant 512 : index
    %90 = vector.load %arg10[%c0_96, %c512_97] : memref<16x640xbf16, #tpu.memory_space<vmem>>, vector<16x128xbf16>
    tpu.vector_store %arg10[%c0_96, %c512_97], %89 {strides = array<i32>} : memref<16x640xbf16, #tpu.memory_space<vmem>>, vector<16x128xbf16>,
    %91 = arith.truncf %86 : vector<16x384xf32> to vector<16x384xbf16>
    %c0_98 = arith.constant 0 : index
    %c128_99 = arith.constant 128 : index
    %92 = vector.load %arg10[%c0_98, %c128_99] : memref<16x640xbf16, #tpu.memory_space<vmem>>, vector<16x384xbf16>
    tpu.vector_store %arg10[%c0_98, %c128_99], %91 {strides = array<i32>} : memref<16x640xbf16, #tpu.memory_space<vmem>>, vector<16x384xbf16>,
    %c0_100 = arith.constant 0 : index
    %c103_101 = arith.constant 103 : index
    %93 = vector.load %arg10[%c0_100, %c103_101] : memref<16x640xbf16, #tpu.memory_space<vmem>>, vector<16x384xbf16>
    %c0_102 = arith.constant 0 : index
    %c0_103 = arith.constant 0 : index
    %94 = vector.load %arg11[%c0_102, %c0_103] : memref<144x384xbf16, #tpu.memory_space<vmem>>, vector<16x384xbf16>
    tpu.vector_store %arg11[%c0_102, %c0_103], %93 {strides = array<i32>} : memref<144x384xbf16, #tpu.memory_space<vmem>>, vector<16x384xbf16>,
    %c0_104 = arith.constant 0 : index
    %c104_105 = arith.constant 104 : index
    %95 = vector.load %arg10[%c0_104, %c104_105] : memref<16x640xbf16, #tpu.memory_space<vmem>>, vector<16x384xbf16>
    %c16_106 = arith.constant 16 : index
    %c0_107 = arith.constant 0 : index
    %96 = vector.load %arg11[%c16_106, %c0_107] : memref<144x384xbf16, #tpu.memory_space<vmem>>, vector<16x384xbf16>
    tpu.vector_store %arg11[%c16_106, %c0_107], %95 {strides = array<i32>} : memref<144x384xbf16, #tpu.memory_space<vmem>>, vector<16x384xbf16>,
    %c0_108 = arith.constant 0 : index
    %c105_109 = arith.constant 105 : index
    %97 = vector.load %arg10[%c0_108, %c105_109] : memref<16x640xbf16, #tpu.memory_space<vmem>>, vector<16x384xbf16>
    %c32_110 = arith.constant 32 : index
    %c0_111 = arith.constant 0 : index
    %98 = vector.load %arg11[%c32_110, %c0_111] : memref<144x384xbf16, #tpu.memory_space<vmem>>, vector<16x384xbf16>
    tpu.vector_store %arg11[%c32_110, %c0_111], %97 {strides = array<i32>} : memref<144x384xbf16, #tpu.memory_space<vmem>>, vector<16x384xbf16>,
    %c0_112 = arith.constant 0 : index
    %c127_113 = arith.constant 127 : index
    %99 = vector.load %arg10[%c0_112, %c127_113] : memref<16x640xbf16, #tpu.memory_space<vmem>>, vector<16x384xbf16>
    %c48_114 = arith.constant 48 : index
    %c0_115 = arith.constant 0 : index
    %100 = vector.load %arg11[%c48_114, %c0_115] : memref<144x384xbf16, #tpu.memory_space<vmem>>, vector<16x384xbf16>
    tpu.vector_store %arg11[%c48_114, %c0_115], %99 {strides = array<i32>} : memref<144x384xbf16, #tpu.memory_space<vmem>>, vector<16x384xbf16>,
    %c0_116 = arith.constant 0 : index
    %c128_117 = arith.constant 128 : index
    %101 = vector.load %arg10[%c0_116, %c128_117] : memref<16x640xbf16, #tpu.memory_space<vmem>>, vector<16x384xbf16>
    %c64_118 = arith.constant 64 : index
    %c0_119 = arith.constant 0 : index
    %102 = vector.load %arg11[%c64_118, %c0_119] : memref<144x384xbf16, #tpu.memory_space<vmem>>, vector<16x384xbf16>
    tpu.vector_store %arg11[%c64_118, %c0_119], %101 {strides = array<i32>} : memref<144x384xbf16, #tpu.memory_space<vmem>>, vector<16x384xbf16>,
    %c0_120 = arith.constant 0 : index
    %c129_121 = arith.constant 129 : index
    %103 = vector.load %arg10[%c0_120, %c129_121] : memref<16x640xbf16, #tpu.memory_space<vmem>>, vector<16x384xbf16>
    %c80_122 = arith.constant 80 : index
    %c0_123 = arith.constant 0 : index
    %104 = vector.load %arg11[%c80_122, %c0_123] : memref<144x384xbf16, #tpu.memory_space<vmem>>, vector<16x384xbf16>
    tpu.vector_store %arg11[%c80_122, %c0_123], %103 {strides = array<i32>} : memref<144x384xbf16, #tpu.memory_space<vmem>>, vector<16x384xbf16>,
    %c0_124 = arith.constant 0 : index
    %c151_125 = arith.constant 151 : index
    %105 = vector.load %arg10[%c0_124, %c151_125] : memref<16x640xbf16, #tpu.memory_space<vmem>>, vector<16x384xbf16>
    %c96_126 = arith.constant 96 : index
    %c0_127 = arith.constant 0 : index
    %106 = vector.load %arg11[%c96_126, %c0_127] : memref<144x384xbf16, #tpu.memory_space<vmem>>, vector<16x384xbf16>
    tpu.vector_store %arg11[%c96_126, %c0_127], %105 {strides = array<i32>} : memref<144x384xbf16, #tpu.memory_space<vmem>>, vector<16x384xbf16>,
    %c0_128 = arith.constant 0 : index
    %c152_129 = arith.constant 152 : index
    %107 = vector.load %arg10[%c0_128, %c152_129] : memref<16x640xbf16, #tpu.memory_space<vmem>>, vector<16x384xbf16>
    %c112_130 = arith.constant 112 : index
    %c0_131 = arith.constant 0 : index
    %108 = vector.load %arg11[%c112_130, %c0_131] : memref<144x384xbf16, #tpu.memory_space<vmem>>, vector<16x384xbf16>
    tpu.vector_store %arg11[%c112_130, %c0_131], %107 {strides = array<i32>} : memref<144x384xbf16, #tpu.memory_space<vmem>>, vector<16x384xbf16>,
    %c0_132 = arith.constant 0 : index
    %c153_133 = arith.constant 153 : index
    %109 = vector.load %arg10[%c0_132, %c153_133] : memref<16x640xbf16, #tpu.memory_space<vmem>>, vector<16x384xbf16>
    %c128_134 = arith.constant 128 : index
    %c0_135 = arith.constant 0 : index
    %110 = vector.load %arg11[%c128_134, %c0_135] : memref<144x384xbf16, #tpu.memory_space<vmem>>, vector<16x384xbf16>
    tpu.vector_store %arg11[%c128_134, %c0_135], %109 {strides = array<i32>} : memref<144x384xbf16, #tpu.memory_space<vmem>>, vector<16x384xbf16>,
    %c0_136 = arith.constant 0 : index
    %c0_137 = arith.constant 0 : index
    %111 = vector.load %arg6[%c0_136, %c0_137] : memref<8x144xbf16, #tpu.memory_space<vmem>>, vector<8x144xbf16>
    %c0_138 = arith.constant 0 : index
    %c0_139 = arith.constant 0 : index
    %112 = vector.load %arg11[%c0_138, %c0_139] : memref<144x384xbf16, #tpu.memory_space<vmem>>, vector<144x384xbf16>
    %cst_140 = arith.constant dense<0.000000e+00> : vector<8x384xf32>
    %113 = tpu.matmul %111, %112, %cst_140 {dimension_numbers = #tpu.dot_dimension_numbers<[1], [0], [0], [1], [0, 0, 1, 1], [], []>} : vector<8x144xbf16>, vector<144x384xbf16>, vector<8x384xf32> -> vector<8x384xf32>
    %114 = vector.extract_strided_slice %113 {offsets = [0, 0], sizes = [1, 384], strides = [1, 1]} : vector<8x384xf32> to vector<1x384xf32>
    %c0_141 = arith.constant 0 : index
    %c0_142 = arith.constant 0 : index
    %115 = vector.load %arg7[%c0_141, %c0_142] : memref<1x1xf32, #tpu.memory_space<vmem>>, vector<1x1xf32>
    %116 = vector.broadcast %115 : vector<1x1xf32> to vector<1x384xf32>
    %117 = arith.addf %114, %116 : vector<1x384xf32>
    %118 = arith.negf %117 : vector<1x384xf32>
    %119 = math.exp %118 : vector<1x384xf32>
    %cst_143 = arith.constant 1.000000e+00 : f32
    %120 = vector.broadcast %cst_143 : f32 to vector<1x384xf32>
    %121 = arith.addf %120, %119 : vector<1x384xf32>
    %122 = arith.divf %120, %121 : vector<1x384xf32>
    %c0_144 = arith.constant 0 : index
    %c0_145 = arith.constant 0 : index
    %c0_146 = arith.constant 0 : index
    %123 = vector.load %arg8[%c0_144, %c0_145, %c0_146] : memref<1x1x384xf32, #tpu.memory_space<vmem>>, vector<1x1x384xf32>
    %124 = vector.shape_cast %123 : vector<1x1x384xf32> to vector<1x384xf32>
    %125 = vector.shape_cast %122 : vector<1x384xf32> to vector<1x1x384xf32>
    tpu.vector_store %arg8[%c0_144, %c0_145, %c0_146], %125 {strides = array<i32>} : memref<1x1x384xf32, #tpu.memory_space<vmem>>, vector<1x1x384xf32>,
    return
  }
  func.func @transform_0(%arg0: i32) -> (i32, i32, i32) {
    %c0_i32 = arith.constant 0 : i32
    %c0_i32_0 = arith.constant 0 : i32
    %c0_i32_1 = arith.constant 0 : i32
    return %arg0, %c0_i32, %c0_i32_0 : i32, i32, i32
  }
  func.func @transform_1(%arg0: i32) -> (i32, i32) {
    %c0_i32 = arith.constant 0 : i32
    %c0_i32_0 = arith.constant 0 : i32
    %c0_i32_1 = arith.constant 0 : i32
    return %c0_i32, %c0_i32_0 : i32, i32
  }
  func.func @transform_2(%arg0: i32) -> (i32, i32) {
    %c0_i32 = arith.constant 0 : i32
    %c0_i32_0 = arith.constant 0 : i32
    %c0_i32_1 = arith.constant 0 : i32
    return %c0_i32, %c0_i32_0 : i32, i32
  }
  func.func @transform_3(%arg0: i32) -> (i32, i32) {
    %c0_i32 = arith.constant 0 : i32
    %c0_i32_0 = arith.constant 0 : i32
    %c0_i32_1 = arith.constant 0 : i32
    return %c0_i32, %c0_i32_0 : i32, i32
  }
  func.func @transform_4(%arg0: i32) -> (i32, i32) {
    %c0_i32 = arith.constant 0 : i32
    %c0_i32_0 = arith.constant 0 : i32
    %c0_i32_1 = arith.constant 0 : i32
    return %c0_i32, %c0_i32_0 : i32, i32
  }
  func.func @transform_5(%arg0: i32) -> (i32, i32) {
    %c0_i32 = arith.constant 0 : i32
    %c0_i32_0 = arith.constant 0 : i32
    %c0_i32_1 = arith.constant 0 : i32
    return %c0_i32, %c0_i32_0 : i32, i32
  }
  func.func @transform_6(%arg0: i32) -> (i32, i32) {
    %c0_i32 = arith.constant 0 : i32
    %c0_i32_0 = arith.constant 0 : i32
    %c0_i32_1 = arith.constant 0 : i32
    return %c0_i32, %c0_i32_0 : i32, i32
  }
  func.func @transform_7(%arg0: i32) -> (i32, i32, i32) {
    %c0_i32 = arith.constant 0 : i32
    %c0_i32_0 = arith.constant 0 : i32
    %c0_i32_1 = arith.constant 0 : i32
    return %arg0, %c0_i32, %c0_i32_0 : i32, i32, i32
  }
}

</mosaic_0001>

<llo_original>
// kernel: squeeze.1
$region0: #{squeeze.1}
  %s0 = inlined_call_operand.vmem [shape: f32[2,384], index: 0, kind: input, shape index: {}]
  %s1 = inlined_call_operand.vmem [shape: f32[2,16,24], index: 1, kind: output, shape index: {}]
  $region1: #{squeeze.1} parent=0
    #allocation0 [shape = 'u8[12288]{0}', space=vmem, size = 0x3000, scoped, tag = 'scoped mem for input reshape']
    %s3 = ssub.s32 4, 1
    %s4 = scalar_lea.vmem %s0, 4
    %v5 = vld [vmem:[%s4] sm:%s3]
    %s6 = scalar_lea.vmem [#allocation0], 16
    %7 = vst [vmem:[%s6] sm:%s3] %v5
    %s8 = scalar_lea.vmem %s0, 2
    %v9 = vld [vmem:[%s8] sm:%s3]
    %s10 = scalar_lea.vmem [#allocation0], 8
    %11 = vst [vmem:[%s10] sm:%s3] %v9
    %v12 = vld [vmem:[%s0] sm:%s3]
    %13 = vst [vmem:[#allocation0] sm:%s3] %v12
    %v14 = vld [vmem:[#allocation0] sm:$0x3]
    %vm15 = vcmask 195584
    %16 = vst.msk [vmem:[%s1] ss:$16 sm:$0x3] %vm15, %v14
    %s17 = scalar_lea.vmem [#allocation0], 16
    %v18 = vld [vmem:[%s17] sm:$0x3]
    %19 = vrot.lane.b32.xlu0 %v18, 120
    %v20 = vpop.permute.xlu0 %19
    %vm21 = vcmask 195584
    %s22 = scalar_lea.vmem %s1, 11
    %23 = vst.msk [vmem:[%s22] ss:$16 sm:$0x3] %vm21, %v20
    %s24 = scalar_lea.vmem [#allocation0], 8
    %v25 = vld [vmem:[%s24] sm:$0x3]
    %26 = vrot.lane.b32.xlu0 %v25, 112
    %v27 = vpop.permute.xlu0 %26
    %vm28 = vcmask 195584
    %s29 = scalar_lea.vmem %s1, 6
    %30 = vst.msk [vmem:[%s29] ss:$16 sm:$0x3] %vm28, %v27
    %v31 = vld [vmem:[#allocation0] sm:$0x3]
    %32 = vrot.lane.b32.xlu0 %v31, 104
    %v33 = vpop.permute.xlu0 %32
    %vm34 = vcmask 195584
    %s35 = scalar_lea.vmem %s1, 1
    %36 = vst.msk [vmem:[%s35] ss:$16 sm:$0x3] %vm34, %v33
    %s37 = scalar_lea.vmem [#allocation0], 16
    %v38 = vld [vmem:[%s37] sm:$0x3]
    %39 = vrot.lane.b32.xlu0 %v38, 96
    %v40 = vpop.permute.xlu0 %39
    %vm41 = vcmask 195584
    %s42 = scalar_lea.vmem %s1, 12
    %43 = vst.msk [vmem:[%s42] ss:$16 sm:$0x3] %vm41, %v40
    %s44 = scalar_lea.vmem [#allocation0], 8
    %v45 = vld [vmem:[%s44] sm:$0x3]
    %46 = vrot.lane.b32.xlu0 %v45, 88
    %v47 = vpop.permute.xlu0 %46
    %vm48 = vcmask 195584
    %s49 = scalar_lea.vmem %s1, 7
    %50 = vst.msk [vmem:[%s49] ss:$16 sm:$0x3] %vm48, %v47
    %v51 = vld [vmem:[#allocation0] sm:$0x3]
    %52 = vrot.lane.b32.xlu0 %v51, 80
    %v53 = vpop.permute.xlu0 %52
    %vm54 = vcmask 195584
    %s55 = scalar_lea.vmem %s1, 2
    %56 = vst.msk [vmem:[%s55] ss:$16 sm:$0x3] %vm54, %v53
    %s57 = scalar_lea.vmem [#allocation0], 16
    %v58 = vld [vmem:[%s57] sm:$0x3]
    %59 = vrot.lane.b32.xlu0 %v58, 72
    %v60 = vpop.permute.xlu0 %59
    %vm61 = vcmask 195584
    %s62 = scalar_lea.vmem %s1, 13
    %63 = vst.msk [vmem:[%s62] ss:$16 sm:$0x3] %vm61, %v60
    %s64 = scalar_lea.vmem [#allocation0], 8
    %v65 = vld [vmem:[%s64] sm:$0x3]
    %66 = vrot.lane.b32.xlu0 %v65, 64
    %v67 = vpop.permute.xlu0 %66
    %vm68 = vcmask 195584
    %s69 = scalar_lea.vmem %s1, 8
    %70 = vst.msk [vmem:[%s69] ss:$16 sm:$0x3] %vm68, %v67
    %v71 = vld [vmem:[#allocation0] sm:$0x3]
    %72 = vrot.lane.b32.xlu0 %v71, 56
    %v73 = vpop.permute.xlu0 %72
    %vm74 = vcmask 195584
    %s75 = scalar_lea.vmem %s1, 3
    %76 = vst.msk [vmem:[%s75] ss:$16 sm:$0x3] %vm74, %v73
    %s77 = scalar_lea.vmem [#allocation0], 16
    %v78 = vld [vmem:[%s77] sm:$0x3]
    %79 = vrot.lane.b32.xlu0 %v78, 48
    %v80 = vpop.permute.xlu0 %79
    %vm81 = vcmask 195584
    %s82 = scalar_lea.vmem %s1, 14
    %83 = vst.msk [vmem:[%s82] ss:$16 sm:$0x3] %vm81, %v80
    %s84 = scalar_lea.vmem [#allocation0], 8
    %v85 = vld [vmem:[%s84] sm:$0x3]
    %86 = vrot.lane.b32.xlu0 %v85, 40
    %v87 = vpop.permute.xlu0 %86
    %vm88 = vcmask 195584
    %s89 = scalar_lea.vmem %s1, 9
    %90 = vst.msk [vmem:[%s89] ss:$16 sm:$0x3] %vm88, %v87
    %v91 = vld [vmem:[#allocation0] sm:$0x3]
    %92 = vrot.lane.b32.xlu0 %v91, 32
    %v93 = vpop.permute.xlu0 %92
    %vm94 = vcmask 195584
    %s95 = scalar_lea.vmem %s1, 4
    %96 = vst.msk [vmem:[%s95] ss:$16 sm:$0x3] %vm94, %v93
    %s97 = scalar_lea.vmem [#allocation0], 16
    %v98 = vld [vmem:[%s97] sm:$0x3]
    %99 = vrot.lane.b32.xlu0 %v98, 24
    %v100 = vpop.permute.xlu0 %99
    %vm101 = vcmask 195584
    %s102 = scalar_lea.vmem %s1, 15
    %103 = vst.msk [vmem:[%s102] ss:$16 sm:$0x3] %vm101, %v100
    %s104 = scalar_lea.vmem [#allocation0], 8
    %v105 = vld [vmem:[%s104] sm:$0x3]
    %s106 = scalar_lea.vmem [#allocation0], 16
    %v107 = vld [vmem:[%s106] sm:$0x3]
    %vm108 = vcmask 916480
    %v109 = vsel %vm108, %v107, %v105
    %110 = vrot.lane.b32.xlu0 %v109, 16
    %v111 = vpop.permute.xlu0 %110
    %vm112 = vcmask 130048
    %s113 = scalar_lea.vmem %s1, 10
    %114 = vst.msk [vmem:[%s113] ss:$16 sm:$0x3] %vm112, %v111
    %vm115 = vcmask 195712
    %s116 = scalar_lea.vmem %s1, 10
    %117 = vst.msk [vmem:[%s116] ss:$16 sm:$0x3] %vm115, %v111
    %v118 = vld [vmem:[#allocation0] sm:$0x3]
    %s119 = scalar_lea.vmem [#allocation0], 8
    %v120 = vld [vmem:[%s119] sm:$0x3]
    %vm121 = vcmask 982016
    %v122 = vsel %vm121, %v120, %v118
    %123 = vrot.lane.b32.xlu0 %v122, 8
    %v124 = vpop.permute.xlu0 %123
    %vm125 = vcmask 64512
    %s126 = scalar_lea.vmem %s1, 5
    %127 = vst.msk [vmem:[%s126] ss:$16 sm:$0x3] %vm125, %v124
    %vm128 = vcmask 195648
    %s129 = scalar_lea.vmem %s1, 5
    %130 = vst.msk [vmem:[%s129] ss:$16 sm:$0x3] %vm128, %v124

// kernel: simple_depth_net.1
$region0: #{simple_depth_net.1}
  #allocation0 [shape = 'u32[]', space=smem, size = 0x4, offset = 0x4, fixed_abs, tag = 'smem constant byte address 0x4 - core index']
  #allocation1 [shape = 'u32[72,128]{1,0:T(1,128)}', space=vmem, size = 0x9000, scoped, tag = 'internal scratch']
  #allocation2 [shape = 'bf16[16,640]{1,0:T(8,128)(2,1)}', space=vmem, size = 0x5000, scoped, tag = 'scratch operand']
  #allocation3 [shape = 'bf16[16,640]{1,0:T(8,128)(2,1)}', space=vmem, size = 0x5000, scoped, tag = 'scratch operand']
  #allocation4 [shape = 'bf16[144,384]{1,0:T(8,128)(2,1)}', space=vmem, size = 0x1b000, scoped, tag = 'scratch operand']
  #allocation5 [shape = 'f32[1,1]{1,0:T(1,128)S(1)}', space=vmem, size = 0x200, scoped, tag = 'scoped memory for simple_depth_net.1']
  %s0 = inlined_call_operand.vmem [shape: bf16[2,16,640], index: 0, kind: input, shape index: {}]
  %s1 = inlined_call_operand.vmem [shape: bf16[16,144], index: 1, kind: input, shape index: {}]
  %s2 = inlined_call_operand.vmem [shape: f32[16,1], index: 2, kind: input, shape index: {}]
  %s3 = inlined_call_operand.vmem [shape: bf16[16,144], index: 3, kind: input, shape index: {}]
  %s4 = inlined_call_operand.vmem [shape: f32[16,1], index: 4, kind: input, shape index: {}]
  %s5 = inlined_call_operand.vmem [shape: bf16[8,144], index: 5, kind: input, shape index: {}]
  %s6 = inlined_call_operand.<no memory space> [shape: f32[1,1], index: 6, kind: input, shape index: {}]
  %s7 = inlined_call_operand.vmem [shape: f32[2,1,384], index: 7, kind: output, shape index: {}]
  %s8 = sld [smem:[#allocation0]]
  $region61: #{simple_depth_net.1} parent=0
    _
  %s10 = ssub.s32 1, %s8
  %s11 = scalar_select 0, %s10, %s8
  %v12 = vstv %s6
  %13 = vst [vmem:[#allocation5] sm:$0x1] %v12
  loop: start=0, step=1, limit=4
  $region2: #{simple_depth_net.1} parent=0 // loop_pre_header
    _
  $region3: #{simple_depth_net.1} parent=0 // loop_header
    %s15 = sphi 0, %s19
    %p16 = scmp.ge.s32.totalorder %s15, 4
    %s25 = sphi 0, %s27
    %s28 = sphi 0, %s25
    %s29 = sphi 0, %s28
    %s45 = sphi 0, %s29
    %s49 = sphi 0, %s49
    %s51 = sphi 0, %s49
    %s52 = sphi 0, %s51
    %s66 = sphi 0, %s52
    %s70 = sphi 0, %s70
    %s72 = sphi 0, %s70
    %s73 = sphi 0, %s72
    %s87 = sphi 0, %s73
    %s91 = sphi 0, %s91
    %s93 = sphi 0, %s91
    %s94 = sphi 0, %s93
    %s108 = sphi 0, %s94
    %s112 = sphi 0, %s112
    %s114 = sphi 0, %s112
    %s115 = sphi 0, %s114
    %s129 = sphi 0, %s115
    %s133 = sphi 0, %s133
    %s135 = sphi 0, %s133
    %s136 = sphi 0, %s135
    %s150 = sphi 0, %s136
    %s154 = sphi 0, %s154
    %s156 = sphi 0, %s154
    %s157 = sphi 0, %s156
    %s171 = sphi 0, %s157
    %s177 = sphi 0, %s179
    %s180 = sphi 0, %s177
    %s181 = sphi 0, %s180
    %s197 = sphi 0, %s181
  $region4: #{simple_depth_net.1} parent=0 // loop_header_branch
    %18 = sbr.rel (%p16) target = $region8
  $region5: #{simple_depth_net.1} parent=0 // loop_body
    %s20 = ssub.s32 %s15, 1
    %s21 = ssub.s32 %s15, 2
    %s22 = sadd.s32 %s15, 1
    %s23 = ssub.s32 %s15, %s22
    %p24 = scmp.eq.s32.totalorder %s23, 0
    %s26 = sadd.s32 %s25, 1
    %s27 = scalar_select %p24, %s25, %s26
    %p30 = pneg %p24
    %p31 = scmp.eq.s32.totalorder %s15, 1
    %p32 = por %p30, %p31
    %p33 = scmp.ne.s32.totalorder %s25, %s28
    %p34 = scmp.eq.s32.totalorder %s15, 0
    %p35 = por %p33, %p34
    %p36 = scmp.ne.s32.totalorder %s25, %s28
    %p37 = scmp.eq.s32.totalorder %s20, 1
    %p38 = por %p36, %p37
    %p39 = scmp.ne.s32.totalorder %s28, %s29
    %p40 = scmp.eq.s32.totalorder %s20, 0
    %p41 = por %p39, %p40
    %p42 = scmp.ne.s32.totalorder %s28, %s29
    %p43 = scmp.eq.s32.totalorder %s21, 1
    %p44 = por %p42, %p43
    %p46 = scmp.ne.s32.totalorder %s29, %s45
    %p47 = scmp.eq.s32.totalorder %s21, 0
    %p48 = por %p46, %p47
    %s50 = sadd.s32 %s49, 1
    %p53 = scmp.eq.s32.totalorder %s15, 1
    %p54 = scmp.ne.s32.totalorder %s49, %s51
    %p55 = scmp.eq.s32.totalorder %s15, 0
    %p56 = por %p54, %p55
    %p57 = scmp.ne.s32.totalorder %s49, %s51
    %p58 = scmp.eq.s32.totalorder %s20, 1
    %p59 = por %p57, %p58
    %p60 = scmp.ne.s32.totalorder %s51, %s52
    %p61 = scmp.eq.s32.totalorder %s20, 0
    %p62 = por %p60, %p61
    %p63 = scmp.ne.s32.totalorder %s51, %s52
    %p64 = scmp.eq.s32.totalorder %s21, 1
    %p65 = por %p63, %p64
    %p67 = scmp.ne.s32.totalorder %s52, %s66
    %p68 = scmp.eq.s32.totalorder %s21, 0
    %p69 = por %p67, %p68
    %s71 = sadd.s32 %s70, 1
    %p74 = scmp.eq.s32.totalorder %s15, 1
    %p75 = scmp.ne.s32.totalorder %s70, %s72
    %p76 = scmp.eq.s32.totalorder %s15, 0
    %p77 = por %p75, %p76
    %p78 = scmp.ne.s32.totalorder %s70, %s72
    %p79 = scmp.eq.s32.totalorder %s20, 1
    %p80 = por %p78, %p79
    %p81 = scmp.ne.s32.totalorder %s72, %s73
    %p82 = scmp.eq.s32.totalorder %s20, 0
    %p83 = por %p81, %p82
    %p84 = scmp.ne.s32.totalorder %s72, %s73
    %p85 = scmp.eq.s32.totalorder %s21, 1
    %p86 = por %p84, %p85
    %p88 = scmp.ne.s32.totalorder %s73, %s87
    %p89 = scmp.eq.s32.totalorder %s21, 0
    %p90 = por %p88, %p89
    %s92 = sadd.s32 %s91, 1
    %p95 = scmp.eq.s32.totalorder %s15, 1
    %p96 = scmp.ne.s32.totalorder %s91, %s93
    %p97 = scmp.eq.s32.totalorder %s15, 0
    %p98 = por %p96, %p97
    %p99 = scmp.ne.s32.totalorder %s91, %s93
    %p100 = scmp.eq.s32.totalorder %s20, 1
    %p101 = por %p99, %p100
    %p102 = scmp.ne.s32.totalorder %s93, %s94
    %p103 = scmp.eq.s32.totalorder %s20, 0
    %p104 = por %p102, %p103
    %p105 = scmp.ne.s32.totalorder %s93, %s94
    %p106 = scmp.eq.s32.totalorder %s21, 1
    %p107 = por %p105, %p106
    %p109 = scmp.ne.s32.totalorder %s94, %s108
    %p110 = scmp.eq.s32.totalorder %s21, 0
    %p111 = por %p109, %p110
    %s113 = sadd.s32 %s112, 1
    %p116 = scmp.eq.s32.totalorder %s15, 1
    %p117 = scmp.ne.s32.totalorder %s112, %s114
    %p118 = scmp.eq.s32.totalorder %s15, 0
    %p119 = por %p117, %p118
    %p120 = scmp.ne.s32.totalorder %s112, %s114
    %p121 = scmp.eq.s32.totalorder %s20, 1
    %p122 = por %p120, %p121
    %p123 = scmp.ne.s32.totalorder %s114, %s115
    %p124 = scmp.eq.s32.totalorder %s20, 0
    %p125 = por %p123, %p124
    %p126 = scmp.ne.s32.totalorder %s114, %s115
    %p127 = scmp.eq.s32.totalorder %s21, 1
    %p128 = por %p126, %p127
    %p130 = scmp.ne.s32.totalorder %s115, %s129
    %p131 = scmp.eq.s32.totalorder %s21, 0
    %p132 = por %p130, %p131
    %s134 = sadd.s32 %s133, 1
    %p137 = scmp.eq.s32.totalorder %s15, 1
    %p138 = scmp.ne.s32.totalorder %s133, %s135
    %p139 = scmp.eq.s32.totalorder %s15, 0
    %p140 = por %p138, %p139
    %p141 = scmp.ne.s32.totalorder %s133, %s135
    %p142 = scmp.eq.s32.totalorder %s20, 1
    %p143 = por %p141, %p142
    %p144 = scmp.ne.s32.totalorder %s135, %s136
    %p145 = scmp.eq.s32.totalorder %s20, 0
    %p146 = por %p144, %p145
    %p147 = scmp.ne.s32.totalorder %s135, %s136
    %p148 = scmp.eq.s32.totalorder %s21, 1
    %p149 = por %p147, %p148
    %p151 = scmp.ne.s32.totalorder %s136, %s150
    %p152 = scmp.eq.s32.totalorder %s21, 0
    %p153 = por %p151, %p152
    %s155 = sadd.s32 %s154, 1
    %p158 = scmp.eq.s32.totalorder %s15, 1
    %p159 = scmp.ne.s32.totalorder %s154, %s156
    %p160 = scmp.eq.s32.totalorder %s15, 0
    %p161 = por %p159, %p160
    %p162 = scmp.ne.s32.totalorder %s154, %s156
    %p163 = scmp.eq.s32.totalorder %s20, 1
    %p164 = por %p162, %p163
    %p165 = scmp.ne.s32.totalorder %s156, %s157
    %p166 = scmp.eq.s32.totalorder %s20, 0
    %p167 = por %p165, %p166
    %p168 = scmp.ne.s32.totalorder %s156, %s157
    %p169 = scmp.eq.s32.totalorder %s21, 1
    %p170 = por %p168, %p169
    %p172 = scmp.ne.s32.totalorder %s157, %s171
    %p173 = scmp.eq.s32.totalorder %s21, 0
    %p174 = por %p172, %p173
    %s175 = ssub.s32 %s15, %s22
    %p176 = scmp.eq.s32.totalorder %s175, 0
    %s178 = sadd.s32 %s177, 1
    %s179 = scalar_select %p176, %s177, %s178
    %p182 = pneg %p176
    %p183 = scmp.eq.s32.totalorder %s15, 1
    %p184 = por %p182, %p183
    %p185 = scmp.ne.s32.totalorder %s177, %s180
    %p186 = scmp.eq.s32.totalorder %s15, 0
    %p187 = por %p185, %p186
    %p188 = scmp.ne.s32.totalorder %s177, %s180
    %p189 = scmp.eq.s32.totalorder %s20, 1
    %p190 = por %p188, %p189
    %p191 = scmp.ne.s32.totalorder %s180, %s181
    %p192 = scmp.eq.s32.totalorder %s20, 0
    %p193 = por %p191, %p192
    %p194 = scmp.ne.s32.totalorder %s180, %s181
    %p195 = scmp.eq.s32.totalorder %s21, 1
    %p196 = por %p194, %p195
    %p198 = scmp.ne.s32.totalorder %s181, %s197
    %p199 = scmp.eq.s32.totalorder %s21, 0
    %p200 = por %p198, %p199
    %p201 = scmp.le.s32.totalorder 1, %s15
    %p202 = scmp.lt.s32.totalorder %s15, 3
    %p203 = pnand %p201, %p202
    %p204 = pneg %p203
    // Predicated region
    $region9: #{simple_depth_net.1} parent=5 // pred_check
      _
    $region10: #{simple_depth_net.1} parent=5 // pred_check_branch
      %206 = sbr.rel (%p203) target = $region12
    $region11: #{simple_depth_net.1} parent=5 // pred_region
      %s207 = ssub.s32 %s15, 1
      // Predicated region
      $region13: #{simple_depth_net.1} parent=11 // pred_check
        %p208 = pneg %p62
      $region14: #{simple_depth_net.1} parent=11 // pred_check_branch
        %210 = sbr.rel (%p208) target = $region16
      $region15: #{simple_depth_net.1} parent=11 // pred_region
        _
      $region16: #{simple_depth_net.1} parent=11 // pred_fallthru
        _
      // Predicated region
      $region17: #{simple_depth_net.1} parent=11 // pred_check
        %p211 = pneg %p83
      $region18: #{simple_depth_net.1} parent=11 // pred_check_branch
        %213 = sbr.rel (%p211) target = $region20
      $region19: #{simple_depth_net.1} parent=11 // pred_region
        _
      $region20: #{simple_depth_net.1} parent=11 // pred_fallthru
        _
      // Predicated region
      $region21: #{simple_depth_net.1} parent=11 // pred_check
        %p214 = pneg %p104
      $region22: #{simple_depth_net.1} parent=11 // pred_check_branch
        %216 = sbr.rel (%p214) target = $region24
      $region23: #{simple_depth_net.1} parent=11 // pred_region
        _
      $region24: #{simple_depth_net.1} parent=11 // pred_fallthru
        _
      // Predicated region
      $region25: #{simple_depth_net.1} parent=11 // pred_check
        %p217 = pneg %p125
      $region26: #{simple_depth_net.1} parent=11 // pred_check_branch
        %219 = sbr.rel (%p217) target = $region28
      $region27: #{simple_depth_net.1} parent=11 // pred_region
        _
      $region28: #{simple_depth_net.1} parent=11 // pred_fallthru
        _
      // Predicated region
      $region29: #{simple_depth_net.1} parent=11 // pred_check
        %p220 = pneg %p146
      $region30: #{simple_depth_net.1} parent=11 // pred_check_branch
        %222 = sbr.rel (%p220) target = $region32
      $region31: #{simple_depth_net.1} parent=11 // pred_region
        _
      $region32: #{simple_depth_net.1} parent=11 // pred_fallthru
        _
      // Predicated region
      $region33: #{simple_depth_net.1} parent=11 // pred_check
        %p223 = pneg %p167
      $region34: #{simple_depth_net.1} parent=11 // pred_check_branch
        %225 = sbr.rel (%p223) target = $region36
      $region35: #{simple_depth_net.1} parent=11 // pred_region
        _
      $region36: #{simple_depth_net.1} parent=11 // pred_fallthru
        _
    $region12: #{simple_depth_net.1} parent=5 // pred_fallthru
      _
    %p226 = scmp.lt.s32.totalorder %s15, 2
    // Predicated region
    $region37: #{simple_depth_net.1} parent=5 // pred_check
      %p227 = pneg %p226
    $region38: #{simple_depth_net.1} parent=5 // pred_check_branch
      %229 = sbr.rel (%p227) target = $region40
    $region39: #{simple_depth_net.1} parent=5 // pred_region
      // Predicated region
      $region41: #{simple_depth_net.1} parent=39 // pred_check
        %p230 = pneg %p35
      $region42: #{simple_depth_net.1} parent=39 // pred_check_branch
        %232 = sbr.rel (%p230) target = $region44
      $region43: #{simple_depth_net.1} parent=39 // pred_region
        %p233 = scmp.lt.s32.totalorder %s15, 1
        %s234 = scalar_select %p233, %s15, 1
        %s235 = smul.addr %s234, 10
        %s236 = smul.addr %s235, 4
        %s237 = scalar_lea.vmem %s0, %s236
      $region44: #{simple_depth_net.1} parent=39 // pred_fallthru
        _
    $region40: #{simple_depth_net.1} parent=5 // pred_fallthru
      _
    %p238 = scmp.le.s32.totalorder 1, %s15
    %p239 = scmp.lt.s32.totalorder %s15, 3
    %p240 = pnand %p238, %p239
    %p241 = pneg %p240
    // Predicated region
    $region45: #{simple_depth_net.1} parent=5 // pred_check
      _
    $region46: #{simple_depth_net.1} parent=5 // pred_check_branch
      %243 = sbr.rel (%p240) target = $region48
    $region47: #{simple_depth_net.1} parent=5 // pred_region
      %s244 = ssub.s32 %s15, 1
      %p245 = scmp.lt.s32.totalorder %s20, 1
      %s246 = scalar_select %p245, %s20, 1
      %s247 = smul.addr %s246, 10
      %s248 = smul.addr %s247, 4
      %s249 = scalar_lea.vmem %s0, %s248
      %p250 = pneg %p41
      %p251 = pneg %p38
      %p252 = pneg %p62
      %p253 = pneg %p59
      %p254 = pneg %p83
      %p255 = pneg %p80
      %p256 = pneg %p104
      %p257 = pneg %p101
      %p258 = pneg %p125
      %p259 = pneg %p122
      %p260 = pneg %p146
      %p261 = pneg %p143
      %p262 = pneg %p167
      %p263 = pneg %p164
      %p264 = pneg %p193
      %p265 = pneg %p190
      %p266 = scmp.lt.s32.totalorder %s20, 1
      %s267 = scalar_select %p266, %s20, 1
      %s268 = smul.addr %s267, 3
      %s269 = scalar_lea.vmem %s7, %s268
      %p270 = scmp.lt.s32.totalorder %s20, 1
      %s271 = scalar_select %p270, %s20, 1
      %s272 = smul.addr %s271, 10
      %s273 = smul.addr %s272, 4
      %s274 = scalar_lea.vmem %s0, %s273
      %p275 = scmp.lt.s32.totalorder %s20, 1
      %s276 = scalar_select %p275, %s20, 1
      %s277 = smul.addr %s276, 3
      %s278 = scalar_lea.vmem %s7, %s277
      %v280 = vlaneseq
      %v281 = vand.u32 %v280, 127
      %v282 = vadd.s32 %v281, 128
      %v283 = vadd.s32 %v281, 256
      %v284 = vcvt.s32.f32 %v281
      %v285 = vcvt.s32.f32 %v282
      %v286 = vcvt.s32.f32 %v283
      %v287 = vadd.f32 %v284, 0.5
      %v288 = vadd.f32 %v285, 0.5
      %v289 = vadd.f32 %v286, 0.5
      %v290 = vmul.f32 %v287, 0.041666668
      %v291 = vmul.f32 %v288, 0.041666668
      %v292 = vmul.f32 %v289, 0.041666668
      %v293 = vfloor.f32 %v290
      %v294 = vfloor.f32 %v291
      %v295 = vfloor.f32 %v292
      %v296 = vmul.f32 %v293, 24.0
      %v297 = vmul.f32 %v294, 24.0
      %v298 = vmul.f32 %v295, 24.0
      %v299 = vsub.f32 %v284, %v296
      %v300 = vsub.f32 %v285, %v297
      %v301 = vsub.f32 %v286, %v298
      %vm302 = vcmp.lt.f32.partialorder %v299, 16.0
      %vm303 = vcmp.lt.f32.partialorder %v300, 16.0
      %vm304 = vcmp.lt.f32.partialorder %v301, 16.0
      %v305 = vld [vmem:[%s274] sm:$0xff]
      %v306 = vld [vmem:[%s274 + $0x8] sm:$0xff]
      %v307 = vld [vmem:[%s274 + $0x14] sm:$0xff]
      %v308 = vld [vmem:[%s274 + $0x1c] sm:$0xff]
      %313 = vrot.lane.b32.xlu0 %v305, 25
      %v314 = vpop.permute.xlu0 %313
      %315 = vrot.lane.b32.xlu0 %v306, 25
      %v316 = vpop.permute.xlu0 %315
      %317 = vrot.lane.b32.xlu0 %v307, 25
      %v318 = vpop.permute.xlu0 %317
      %319 = vrot.lane.b32.xlu0 %v308, 25
      %v320 = vpop.permute.xlu0 %319
      %v321 = vrot.slane %v314, 4
      %v322 = vrot.slane %v316, 4
      %v323 = vrot.slane %v318, 4
      %v324 = vrot.slane %v320, 4
      %vm325 = vcmask 1043456
      %v326 = vsel %vm325, %v321, %v322
      %vm327 = vcmask 203776
      %v328 = vsel %vm327, %v314, %v326
      %v329 = vsel %vm327, %v316, %v322
      %v330 = vsel %vm325, %v323, %v324
      %v331 = vsel %vm327, %v318, %v330
      %v332 = vsel %vm327, %v320, %v324
      %337 = vst [vmem:[#allocation4] sm:$0xff] %v328
      %338 = vst [vmem:[#allocation4 + $0x8] sm:$0xf] %v329
      %339 = vst [vmem:[#allocation4 + $0xc] sm:$0xff] %v331
      %340 = vst [vmem:[#allocation4 + $0x14] sm:$0xf] %v332
      %v341 = vld [vmem:[%s274] sm:$0xff]
      %v342 = vld [vmem:[%s274 + $0x8] sm:$0xff]
      %v343 = vld [vmem:[%s274 + $0x14] sm:$0xff]
      %v344 = vld [vmem:[%s274 + $0x1c] sm:$0xff]
      %349 = vrot.lane.b32.xlu0 %v341, 24
      %v350 = vpop.permute.xlu0 %349
      %351 = vrot.lane.b32.xlu0 %v342, 24
      %v352 = vpop.permute.xlu0 %351
      %353 = vrot.lane.b32.xlu0 %v343, 24
      %v354 = vpop.permute.xlu0 %353
      %355 = vrot.lane.b32.xlu0 %v344, 24
      %v356 = vpop.permute.xlu0 %355
      %v357 = vrot.slane %v350, 4
      %v358 = vrot.slane %v352, 4
      %v359 = vrot.slane %v354, 4
      %v360 = vrot.slane %v356, 4
      %v361 = vsel %vm325, %v357, %v358
      %vm362 = vcmask 195584
      %v363 = vsel %vm362, %v350, %v361
      %v364 = vsel %vm362, %v352, %v358
      %v365 = vsel %vm325, %v359, %v360
      %v366 = vsel %vm362, %v354, %v365
      %v367 = vsel %vm362, %v356, %v360
      %372 = vst [vmem:[#allocation4 + $0x18] sm:$0xff] %v363
      %373 = vst [vmem:[#allocation4 + $0x20] sm:$0xf] %v364
      %374 = vst [vmem:[#allocation4 + $0x24] sm:$0xff] %v366
      %375 = vst [vmem:[#allocation4 + $0x2c] sm:$0xf] %v367
      %v376 = vld [vmem:[%s274] sm:$0xff]
      %v377 = vld [vmem:[%s274 + $0x8] sm:$0xff]
      %v378 = vld [vmem:[%s274 + $0x14] sm:$0xff]
      %v379 = vld [vmem:[%s274 + $0x1c] sm:$0xff]
      %384 = vrot.lane.b32.xlu0 %v376, 23
      %v385 = vpop.permute.xlu0 %384
      %386 = vrot.lane.b32.xlu0 %v377, 23
      %v387 = vpop.permute.xlu0 %386
      %388 = vrot.lane.b32.xlu0 %v378, 23
      %v389 = vpop.permute.xlu0 %388
      %390 = vrot.lane.b32.xlu0 %v379, 23
      %v391 = vpop.permute.xlu0 %390
      %v392 = vrot.slane %v385, 4
      %v393 = vrot.slane %v387, 4
      %v394 = vrot.slane %v389, 4
      %v395 = vrot.slane %v391, 4
      %v396 = vsel %vm325, %v392, %v393
      %vm397 = vcmask 187392
      %v398 = vsel %vm397, %v385, %v396
      %v399 = vsel %vm397, %v387, %v393
      %v400 = vsel %vm325, %v394, %v395
      %v401 = vsel %vm397, %v389, %v400
      %v402 = vsel %vm397, %v391, %v395
      %407 = vst [vmem:[#allocation4 + $0x30] sm:$0xff] %v398
      %408 = vst [vmem:[#allocation4 + $0x38] sm:$0xf] %v399
      %409 = vst [vmem:[#allocation4 + $0x3c] sm:$0xff] %v401
      %410 = vst [vmem:[#allocation4 + $0x44] sm:$0xf] %v402
      %v411 = vld [vmem:[%s274] sm:$0xff]
      %v412 = vld [vmem:[%s274 + $0x8] sm:$0xff]
      %v413 = vld [vmem:[%s274 + $0x14] sm:$0xff]
      %v414 = vld [vmem:[%s274 + $0x1c] sm:$0xff]
      %419 = vrot.lane.b32.xlu0 %v411, 1
      %v420 = vpop.permute.xlu0 %419
      %421 = vrot.lane.b32.xlu0 %v412, 1
      %v422 = vpop.permute.xlu0 %421
      %423 = vrot.lane.b32.xlu0 %v413, 1
      %v424 = vpop.permute.xlu0 %423
      %425 = vrot.lane.b32.xlu0 %v414, 1
      %v426 = vpop.permute.xlu0 %425
      %v427 = vrot.slane %v420, 4
      %v428 = vrot.slane %v422, 4
      %v429 = vrot.slane %v424, 4
      %v430 = vrot.slane %v426, 4
      %v431 = vsel %vm325, %v427, %v428
      %vm432 = vcmask 7168
      %v433 = vsel %vm432, %v420, %v431
      %v434 = vsel %vm432, %v422, %v428
      %v435 = vsel %vm325, %v429, %v430
      %v436 = vsel %vm432, %v424, %v435
      %v437 = vsel %vm432, %v426, %v430
      %442 = vst [vmem:[#allocation4 + $0x48] sm:$0xff] %v433
      %443 = vst [vmem:[#allocation4 + $0x50] sm:$0xf] %v434
      %444 = vst [vmem:[#allocation4 + $0x54] sm:$0xff] %v436
      %445 = vst [vmem:[#allocation4 + $0x5c] sm:$0xf] %v437
      %v446 = vld [vmem:[%s274 + $0x4] sm:$0xff]
      %v447 = vld [vmem:[%s274 + $0xc] sm:$0xf]
      %v448 = vld [vmem:[%s274 + $0x18] sm:$0xff]
      %v449 = vld [vmem:[%s274 + $0x20] sm:$0xf]
      %450 = vst [vmem:[#allocation4 + $0x60] sm:$0xff] %v446
      %451 = vst [vmem:[#allocation4 + $0x68] sm:$0xf] %v447
      %452 = vst [vmem:[#allocation4 + $0x6c] sm:$0xff] %v448
      %453 = vst [vmem:[#allocation4 + $0x74] sm:$0xf] %v449
      %v454 = vld [vmem:[%s274 + $0x4] sm:$0xff]
      %v455 = vld [vmem:[%s274 + $0xc] sm:$0xff]
      %v456 = vld [vmem:[%s274 + $0x18] sm:$0xff]
      %v457 = vld [vmem:[%s274 + $0x20] sm:$0xff]
      %462 = vrot.lane.b32.xlu0 %v454, 127
      %v463 = vpop.permute.xlu0 %462
      %464 = vrot.lane.b32.xlu0 %v455, 127
      %v465 = vpop.permute.xlu0 %464
      %466 = vrot.lane.b32.xlu0 %v456, 127
      %v467 = vpop.permute.xlu0 %466
      %468 = vrot.lane.b32.xlu0 %v457, 127
      %v469 = vpop.permute.xlu0 %468
      %v470 = vrot.slane %v463, 4
      %v471 = vrot.slane %v465, 4
      %v472 = vrot.slane %v467, 4
      %v473 = vrot.slane %v469, 4
      %v474 = vsel %vm325, %v470, %v471
      %vm475 = vcmask 1039360
      %v476 = vsel %vm475, %v463, %v474
      %v477 = vsel %vm475, %v465, %v471
      %v478 = vsel %vm325, %v472, %v473
      %v479 = vsel %vm475, %v467, %v478
      %v480 = vsel %vm475, %v469, %v473
      %485 = vst [vmem:[#allocation4 + $0x78] sm:$0xff] %v476
      %486 = vst [vmem:[#allocation4 + $0x80] sm:$0xf] %v477
      %487 = vst [vmem:[#allocation4 + $0x84] sm:$0xff] %v479
      %488 = vst [vmem:[#allocation4 + $0x8c] sm:$0xf] %v480
      %v489 = vld [vmem:[%s274 + $0x4] sm:$0xff]
      %v490 = vld [vmem:[%s274 + $0xc] sm:$0xff]
      %v491 = vld [vmem:[%s274 + $0x18] sm:$0xff]
      %v492 = vld [vmem:[%s274 + $0x20] sm:$0xff]
      %497 = vrot.lane.b32.xlu0 %v489, 105
      %v498 = vpop.permute.xlu0 %497
      %499 = vrot.lane.b32.xlu0 %v490, 105
      %v500 = vpop.permute.xlu0 %499
      %501 = vrot.lane.b32.xlu0 %v491, 105
      %v502 = vpop.permute.xlu0 %501
      %503 = vrot.lane.b32.xlu0 %v492, 105
      %v504 = vpop.permute.xlu0 %503
      %v505 = vrot.slane %v498, 4
      %v506 = vrot.slane %v500, 4
      %v507 = vrot.slane %v502, 4
      %v508 = vrot.slane %v504, 4
      %v509 = vsel %vm325, %v505, %v506
      %vm510 = vcmask 859136
      %v511 = vsel %vm510, %v498, %v509
      %v512 = vsel %vm510, %v500, %v506
      %v513 = vsel %vm325, %v507, %v508
      %v514 = vsel %vm510, %v502, %v513
      %v515 = vsel %vm510, %v504, %v508
      %520 = vst [vmem:[#allocation4 + $0x90] sm:$0xff] %v511
      %521 = vst [vmem:[#allocation4 + $0x98] sm:$0xf] %v512
      %522 = vst [vmem:[#allocation4 + $0x9c] sm:$0xff] %v514
      %523 = vst [vmem:[#allocation4 + $0xa4] sm:$0xf] %v515
      %v524 = vld [vmem:[%s274 + $0x4] sm:$0xff]
      %v525 = vld [vmem:[%s274 + $0xc] sm:$0xff]
      %v526 = vld [vmem:[%s274 + $0x18] sm:$0xff]
      %v527 = vld [vmem:[%s274 + $0x20] sm:$0xff]
      %532 = vrot.lane.b32.xlu0 %v524, 104
      %v533 = vpop.permute.xlu0 %532
      %534 = vrot.lane.b32.xlu0 %v525, 104
      %v535 = vpop.permute.xlu0 %534
      %536 = vrot.lane.b32.xlu0 %v526, 104
      %v537 = vpop.permute.xlu0 %536
      %538 = vrot.lane.b32.xlu0 %v527, 104
      %v539 = vpop.permute.xlu0 %538
      %v540 = vrot.slane %v533, 4
      %v541 = vrot.slane %v535, 4
      %v542 = vrot.slane %v537, 4
      %v543 = vrot.slane %v539, 4
      %v544 = vsel %vm325, %v540, %v541
      %vm545 = vcmask 850944
      %v546 = vsel %vm545, %v533, %v544
      %v547 = vsel %vm545, %v535, %v541
      %v548 = vsel %vm325, %v542, %v543
      %v549 = vsel %vm545, %v537, %v548
      %v550 = vsel %vm545, %v539, %v543
      %555 = vst [vmem:[#allocation4 + $0xa8] sm:$0xff] %v546
      %556 = vst [vmem:[#allocation4 + $0xb0] sm:$0xf] %v547
      %557 = vst [vmem:[#allocation4 + $0xb4] sm:$0xff] %v549
      %558 = vst [vmem:[#allocation4 + $0xbc] sm:$0xf] %v550
      %v559 = vld [vmem:[%s274 + $0x4] sm:$0xff]
      %v560 = vld [vmem:[%s274 + $0xc] sm:$0xff]
      %v561 = vld [vmem:[%s274 + $0x18] sm:$0xff]
      %v562 = vld [vmem:[%s274 + $0x20] sm:$0xff]
      %567 = vrot.lane.b32.xlu0 %v559, 103
      %v568 = vpop.permute.xlu0 %567
      %569 = vrot.lane.b32.xlu0 %v560, 103
      %v570 = vpop.permute.xlu0 %569
      %571 = vrot.lane.b32.xlu0 %v561, 103
      %v572 = vpop.permute.xlu0 %571
      %573 = vrot.lane.b32.xlu0 %v562, 103
      %v574 = vpop.permute.xlu0 %573
      %v575 = vrot.slane %v568, 4
      %v576 = vrot.slane %v570, 4
      %v577 = vrot.slane %v572, 4
      %v578 = vrot.slane %v574, 4
      %v579 = vsel %vm325, %v575, %v576
      %vm580 = vcmask 842752
      %v581 = vsel %vm580, %v568, %v579
      %v582 = vsel %vm580, %v570, %v576
      %v583 = vsel %vm325, %v577, %v578
      %v584 = vsel %vm580, %v572, %v583
      %v585 = vsel %vm580, %v574, %v578
      %590 = vst [vmem:[#allocation4 + $0xc0] sm:$0xff] %v581
      %591 = vst [vmem:[#allocation4 + $0xc8] sm:$0xf] %v582
      %592 = vst [vmem:[#allocation4 + $0xcc] sm:$0xff] %v584
      %593 = vst [vmem:[#allocation4 + $0xd4] sm:$0xf] %v585
      %v594 = vld [vmem:[%s1] sm:$0xff]
      %v595 = vld [vmem:[%s1 + $0x8] sm:$0xff]
      %v596 = vld [vmem:[#allocation4] sm:$0xff]
      %v597 = vld [vmem:[#allocation4 + $0x8] sm:$0xf]
      %v598 = vld [vmem:[#allocation4 + $0xc] sm:$0xff]
      %v599 = vld [vmem:[#allocation4 + $0x14] sm:$0xf]
      %v600 = vld [vmem:[#allocation4 + $0x18] sm:$0xff]
      %v601 = vld [vmem:[#allocation4 + $0x20] sm:$0xf]
      %v602 = vld [vmem:[#allocation4 + $0x24] sm:$0xff]
      %v603 = vld [vmem:[#allocation4 + $0x2c] sm:$0xf]
      %v604 = vld [vmem:[#allocation4 + $0x30] sm:$0xff]
      %v605 = vld [vmem:[#allocation4 + $0x38] sm:$0xf]
      %v606 = vld [vmem:[#allocation4 + $0x3c] sm:$0xff]
      %v607 = vld [vmem:[#allocation4 + $0x44] sm:$0xf]
      %v608 = vld [vmem:[#allocation4 + $0x48] sm:$0xff]
      %v609 = vld [vmem:[#allocation4 + $0x50] sm:$0xf]
      %v610 = vld [vmem:[#allocation4 + $0x54] sm:$0xff]
      %v611 = vld [vmem:[#allocation4 + $0x5c] sm:$0xf]
      %v612 = vld [vmem:[#allocation4 + $0x60] sm:$0xff]
      %v613 = vld [vmem:[#allocation4 + $0x68] sm:$0xf]
      %v614 = vld [vmem:[#allocation4 + $0x6c] sm:$0xff]
      %v615 = vld [vmem:[#allocation4 + $0x74] sm:$0xf]
      %v616 = vld [vmem:[#allocation4 + $0x78] sm:$0xff]
      %v617 = vld [vmem:[#allocation4 + $0x80] sm:$0xf]
      %v618 = vld [vmem:[#allocation4 + $0x84] sm:$0xff]
      %v619 = vld [vmem:[#allocation4 + $0x8c] sm:$0xf]
      %v620 = vld [vmem:[#allocation4 + $0x90] sm:$0xff]
      %v621 = vld [vmem:[#allocation4 + $0x98] sm:$0xf]
      %v622 = vld [vmem:[#allocation4 + $0x9c] sm:$0xff]
      %v623 = vld [vmem:[#allocation4 + $0xa4] sm:$0xf]
      %v624 = vld [vmem:[#allocation4 + $0xa8] sm:$0xff]
      %v625 = vld [vmem:[#allocation4 + $0xb0] sm:$0xf]
      %v626 = vld [vmem:[#allocation4 + $0xb4] sm:$0xff]
      %v627 = vld [vmem:[#allocation4 + $0xbc] sm:$0xf]
      %v628 = vld [vmem:[#allocation4 + $0xc0] sm:$0xff]
      %v629 = vld [vmem:[#allocation4 + $0xc8] sm:$0xf]
      %v630 = vld [vmem:[#allocation4 + $0xcc] sm:$0xff]
      %v631 = vld [vmem:[#allocation4 + $0xd4] sm:$0xf]
      %v632 = vld [vmem:[%s2] sm:$0xff]
      %v633 = vld [vmem:[%s2 + $0x8] sm:$0xff]
      %635 = vset.pattern.permute.xlu0 0
      %636 = vperm.xlu0 %635, %v632
      %v637 = vpop.permute.xlu0 %636
      %640 = vset.pattern.permute.xlu0 0
      %641 = vperm.xlu0 %640, %v633
      %v642 = vpop.permute.xlu0 %641
      %v646 = vunpack.c.l.b16 %v594
      %v647 = vunpack.c.h.b16 %v594
      %v648 = vunpack.c.l.b16 %v595
      %v649 = vunpack.c.h.b16 %v595
      %v650 = vpack.c.b16 %v648, %v646
      %v651 = vpack.c.b16 %v649, %v647
      %v689 = vunpack.c.l.b16 %v596
      %v690 = vunpack.c.h.b16 %v596
      %v691 = vunpack.c.l.b16 %v597
      %v692 = vunpack.c.l.b16 %v598
      %v693 = vunpack.c.h.b16 %v598
      %v694 = vunpack.c.l.b16 %v599
      %v695 = vunpack.c.l.b16 %v600
      %v696 = vunpack.c.h.b16 %v600
      %v697 = vunpack.c.l.b16 %v601
      %v698 = vunpack.c.l.b16 %v602
      %v699 = vunpack.c.h.b16 %v602
      %v700 = vunpack.c.l.b16 %v603
      %v701 = vunpack.c.l.b16 %v604
      %v702 = vunpack.c.h.b16 %v604
      %v703 = vunpack.c.l.b16 %v605
      %v704 = vunpack.c.l.b16 %v606
      %v705 = vunpack.c.h.b16 %v606
      %v706 = vunpack.c.l.b16 %v607
      %v707 = vunpack.c.l.b16 %v608
      %v708 = vunpack.c.h.b16 %v608
      %v709 = vunpack.c.l.b16 %v609
      %v710 = vunpack.c.l.b16 %v610
      %v711 = vunpack.c.h.b16 %v610
      %v712 = vunpack.c.l.b16 %v611
      %v713 = vunpack.c.l.b16 %v612
      %v714 = vunpack.c.h.b16 %v612
      %v715 = vunpack.c.l.b16 %v613
      %v716 = vunpack.c.l.b16 %v614
      %v717 = vunpack.c.h.b16 %v614
      %v718 = vunpack.c.l.b16 %v615
      %v719 = vunpack.c.l.b16 %v616
      %v720 = vunpack.c.h.b16 %v616
      %v721 = vunpack.c.l.b16 %v617
      %v722 = vunpack.c.l.b16 %v618
      %v723 = vunpack.c.h.b16 %v618
      %v724 = vunpack.c.l.b16 %v619
      %v725 = vunpack.c.l.b16 %v620
      %v726 = vunpack.c.h.b16 %v620
      %v727 = vunpack.c.l.b16 %v621
      %v728 = vunpack.c.l.b16 %v622
      %v729 = vunpack.c.h.b16 %v622
      %v730 = vunpack.c.l.b16 %v623
      %v731 = vunpack.c.l.b16 %v624
      %v732 = vunpack.c.h.b16 %v624
      %v733 = vunpack.c.l.b16 %v625
      %v734 = vunpack.c.l.b16 %v626
      %v735 = vunpack.c.h.b16 %v626
      %v736 = vunpack.c.l.b16 %v627
      %v737 = vunpack.c.l.b16 %v628
      %v738 = vunpack.c.h.b16 %v628
      %v739 = vunpack.c.l.b16 %v629
      %v740 = vunpack.c.l.b16 %v630
      %v741 = vunpack.c.h.b16 %v630
      %v742 = vunpack.c.l.b16 %v631
      %v743 = vpack.c.b16 %v692, %v689
      %v744 = vpack.c.b16 %v693, %v690
      %v745 = vpack.c.b16 %v694, %v691
      %v746 = vpack.c.b16 %v698, %v695
      %v747 = vpack.c.b16 %v699, %v696
      %v748 = vpack.c.b16 %v700, %v697
      %v749 = vpack.c.b16 %v704, %v701
      %v750 = vpack.c.b16 %v705, %v702
      %v751 = vpack.c.b16 %v706, %v703
      %v752 = vpack.c.b16 %v710, %v707
      %v753 = vpack.c.b16 %v711, %v708
      %v754 = vpack.c.b16 %v712, %v709
      %v755 = vpack.c.b16 %v716, %v713
      %v756 = vpack.c.b16 %v717, %v714
      %v757 = vpack.c.b16 %v718, %v715
      %v758 = vpack.c.b16 %v722, %v719
      %v759 = vpack.c.b16 %v723, %v720
      %v760 = vpack.c.b16 %v724, %v721
      %v761 = vpack.c.b16 %v728, %v725
      %v762 = vpack.c.b16 %v729, %v726
      %v763 = vpack.c.b16 %v730, %v727
      %v764 = vpack.c.b16 %v734, %v731
      %v765 = vpack.c.b16 %v735, %v732
      %v766 = vpack.c.b16 %v736, %v733
      %v767 = vpack.c.b16 %v740, %v737
      %v768 = vpack.c.b16 %v741, %v738
      %v769 = vpack.c.b16 %v742, %v739
      %vm797 = vcmask 130048
      %v799 = vsel %vm797, %v651, 0
      %801 = vmatpush.bf16.msra.mxu0 %v764
      %802 = vmatpush.bf16.msra.mxu0 %v761
      %803 = vmatpush.bf16.msra.mxu0 %v758
      %804 = vmatpush.bf16.msra.mxu0 %v755
      %805 = vmatpush.bf16.msra.mxu0 %v752
      %806 = vmatpush.bf16.msra.mxu0 %v749
      %807 = vmatpush.bf16.msra.mxu0 %v746
      %808 = vmatpush.bf16.msra.mxu0 %v743
      %809 = vmatmul.bf16.gmra.mxu0 %v650
      %v810 = vpop.f32.mrf.mxu0
      %v811 = vadd.f32 %v637, %v810
      %v812 = vpop.f32.mrf.mxu0
      %v813 = vadd.f32 %v642, %v812
      %814 = vdwg.mxu0
      %815 = vmatpush.bf16.msra.mxu0 0
      %816 = vmatpush.bf16.msra.mxu0 0
      %817 = vmatpush.bf16.msra.mxu0 0
      %818 = vmatpush.bf16.msra.mxu0 0
      %819 = vmatpush.bf16.msra.mxu0 0
      %820 = vmatpush.bf16.msra.mxu0 0
      %821 = vmatpush.bf16.msra.mxu0 0
      %822 = vmatpush.bf16.msra.mxu0 %v767
      %823 = vmatmul.bf16.gmra.mxu0 %v799
      %v824 = vpop.f32.mrf.mxu0
      %v825 = vadd.f32 %v811, %v824
      %v826 = vpop.f32.mrf.mxu0
      %v827 = vadd.f32 %v813, %v826
      %828 = vdwg.mxu0
      %829 = vmatpush.bf16.msra.mxu0 %v765
      %830 = vmatpush.bf16.msra.mxu0 %v762
      %831 = vmatpush.bf16.msra.mxu0 %v759
      %832 = vmatpush.bf16.msra.mxu0 %v756
      %833 = vmatpush.bf16.msra.mxu0 %v753
      %834 = vmatpush.bf16.msra.mxu0 %v750
      %835 = vmatpush.bf16.msra.mxu0 %v747
      %836 = vmatpush.bf16.msra.mxu0 %v744
      %837 = vmatmul.bf16.gmra.mxu0 %v650
      %v838 = vpop.f32.mrf.mxu0
      %v839 = vadd.f32 %v637, %v838
      %v840 = vpop.f32.mrf.mxu0
      %v841 = vadd.f32 %v642, %v840
      %842 = vdwg.mxu0
      %843 = vmatpush.bf16.msra.mxu0 0
      %844 = vmatpush.bf16.msra.mxu0 0
      %845 = vmatpush.bf16.msra.mxu0 0
      %846 = vmatpush.bf16.msra.mxu0 0
      %847 = vmatpush.bf16.msra.mxu0 0
      %848 = vmatpush.bf16.msra.mxu0 0
      %849 = vmatpush.bf16.msra.mxu0 0
      %850 = vmatpush.bf16.msra.mxu0 %v768
      %851 = vmatmul.bf16.gmra.mxu0 %v799
      %v852 = vpop.f32.mrf.mxu0
      %v853 = vadd.f32 %v839, %v852
      %v854 = vpop.f32.mrf.mxu0
      %v855 = vadd.f32 %v841, %v854
      %856 = vdwg.mxu0
      %857 = vmatpush.bf16.msra.mxu0 %v766
      %858 = vmatpush.bf16.msra.mxu0 %v763
      %859 = vmatpush.bf16.msra.mxu0 %v760
      %860 = vmatpush.bf16.msra.mxu0 %v757
      %861 = vmatpush.bf16.msra.mxu0 %v754
      %862 = vmatpush.bf16.msra.mxu0 %v751
      %863 = vmatpush.bf16.msra.mxu0 %v748
      %864 = vmatpush.bf16.msra.mxu0 %v745
      %865 = vmatmul.bf16.gmra.mxu0 %v650
      %v866 = vpop.f32.mrf.mxu0
      %v867 = vadd.f32 %v637, %v866
      %v868 = vpop.f32.mrf.mxu0
      %v869 = vadd.f32 %v642, %v868
      %870 = vdwg.mxu0
      %871 = vmatpush.bf16.msra.mxu0 0
      %872 = vmatpush.bf16.msra.mxu0 0
      %873 = vmatpush.bf16.msra.mxu0 0
      %874 = vmatpush.bf16.msra.mxu0 0
      %875 = vmatpush.bf16.msra.mxu0 0
      %876 = vmatpush.bf16.msra.mxu0 0
      %877 = vmatpush.bf16.msra.mxu0 0
      %878 = vmatpush.bf16.msra.mxu0 %v769
      %879 = vmatmul.bf16.gmra.mxu0 %v799
      %v880 = vpop.f32.mrf.mxu0
      %v881 = vadd.f32 %v867, %v880
      %v882 = vpop.f32.mrf.mxu0
      %v883 = vadd.f32 %v869, %v882
      %884 = vdwg.mxu0
      %v885 = vmax.f32 %v825, 0.0
      %v886 = vmax.f32 %v853, 0.0
      %v887 = vmax.f32 %v881, 0.0
      %v888 = vmax.f32 %v827, 0.0
      %v889 = vmax.f32 %v855, 0.0
      %v890 = vmax.f32 %v883, 0.0
      %v891 = vsel %vm302, 1, 0
      %v892 = vsel %vm303, 1, 0
      %v893 = vsel %vm304, 1, 0
      %vm894 = vcmp.eq.s32.totalorder %v891, 1
      %vm895 = vcmp.eq.s32.totalorder %v892, 1
      %vm896 = vcmp.eq.s32.totalorder %v893, 1
      %v897 = vsel %vm894, %v885, 0.0
      %v898 = vsel %vm895, %v886, 0.0
      %v899 = vsel %vm896, %v887, 0.0
      %v900 = vsel %vm894, %v888, 0.0
      %v901 = vsel %vm895, %v889, 0.0
      %v902 = vsel %vm896, %v890, 0.0
      %903 = vst [vmem:[#allocation2] sm:$0xf] 0
      %904 = vst [vmem:[#allocation2 + $0x14] sm:$0xf] 0
      %905 = vst [vmem:[#allocation2 + $0x10] sm:$0xf] 0
      %906 = vst [vmem:[#allocation2 + $0x24] sm:$0xf] 0
      %v907 = vpack.c.bf16 %v898, %v897
      %v908 = vpack.c.bf16 %v899, %v899
      %v909 = vpack.c.bf16 %v901, %v900
      %v910 = vpack.c.bf16 %v902, %v902
      %911 = vst [vmem:[#allocation2 + $0x4] sm:$0xff] %v907
      %912 = vst [vmem:[#allocation2 + $0xc] sm:$0xf] %v908
      %913 = vst [vmem:[#allocation2 + $0x18] sm:$0xff] %v909
      %914 = vst [vmem:[#allocation2 + $0x20] sm:$0xf] %v910
      %v915 = vld [vmem:[#allocation2] sm:$0xff]
      %v916 = vld [vmem:[#allocation2 + $0x8] sm:$0xff]
      %v917 = vld [vmem:[#allocation2 + $0x14] sm:$0xff]
      %v918 = vld [vmem:[#allocation2 + $0x1c] sm:$0xff]
      %923 = vrot.lane.b32.xlu0 %v915, 25
      %v924 = vpop.permute.xlu0 %923
      %925 = vrot.lane.b32.xlu0 %v916, 25
      %v926 = vpop.permute.xlu0 %925
      %927 = vrot.lane.b32.xlu0 %v917, 25
      %v928 = vpop.permute.xlu0 %927
      %929 = vrot.lane.b32.xlu0 %v918, 25
      %v930 = vpop.permute.xlu0 %929
      %v931 = vrot.slane %v924, 4
      %v932 = vrot.slane %v926, 4
      %v933 = vrot.slane %v928, 4
      %v934 = vrot.slane %v930, 4
      %v935 = vsel %vm325, %v931, %v932
      %v936 = vsel %vm327, %v924, %v935
      %v937 = vsel %vm327, %v926, %v932
      %v938 = vsel %vm325, %v933, %v934
      %v939 = vsel %vm327, %v928, %v938
      %v940 = vsel %vm327, %v930, %v934
      %945 = vst [vmem:[#allocation4] sm:$0xff] %v936
      %946 = vst [vmem:[#allocation4 + $0x8] sm:$0xf] %v937
      %947 = vst [vmem:[#allocation4 + $0xc] sm:$0xff] %v939
      %948 = vst [vmem:[#allocation4 + $0x14] sm:$0xf] %v940
      %v949 = vld [vmem:[#allocation2] sm:$0xff]
      %v950 = vld [vmem:[#allocation2 + $0x8] sm:$0xff]
      %v951 = vld [vmem:[#allocation2 + $0x14] sm:$0xff]
      %v952 = vld [vmem:[#allocation2 + $0x1c] sm:$0xff]
      %957 = vrot.lane.b32.xlu0 %v949, 24
      %v958 = vpop.permute.xlu0 %957
      %959 = vrot.lane.b32.xlu0 %v950, 24
      %v960 = vpop.permute.xlu0 %959
      %961 = vrot.lane.b32.xlu0 %v951, 24
      %v962 = vpop.permute.xlu0 %961
      %963 = vrot.lane.b32.xlu0 %v952, 24
      %v964 = vpop.permute.xlu0 %963
      %v965 = vrot.slane %v958, 4
      %v966 = vrot.slane %v960, 4
      %v967 = vrot.slane %v962, 4
      %v968 = vrot.slane %v964, 4
      %v969 = vsel %vm325, %v965, %v966
      %v970 = vsel %vm362, %v958, %v969
      %v971 = vsel %vm362, %v960, %v966
      %v972 = vsel %vm325, %v967, %v968
      %v973 = vsel %vm362, %v962, %v972
      %v974 = vsel %vm362, %v964, %v968
      %979 = vst [vmem:[#allocation4 + $0x18] sm:$0xff] %v970
      %980 = vst [vmem:[#allocation4 + $0x20] sm:$0xf] %v971
      %981 = vst [vmem:[#allocation4 + $0x24] sm:$0xff] %v973
      %982 = vst [vmem:[#allocation4 + $0x2c] sm:$0xf] %v974
      %v983 = vld [vmem:[#allocation2] sm:$0xff]
      %v984 = vld [vmem:[#allocation2 + $0x8] sm:$0xff]
      %v985 = vld [vmem:[#allocation2 + $0x14] sm:$0xff]
      %v986 = vld [vmem:[#allocation2 + $0x1c] sm:$0xff]
      %991 = vrot.lane.b32.xlu0 %v983, 23
      %v992 = vpop.permute.xlu0 %991
      %993 = vrot.lane.b32.xlu0 %v984, 23
      %v994 = vpop.permute.xlu0 %993
      %995 = vrot.lane.b32.xlu0 %v985, 23
      %v996 = vpop.permute.xlu0 %995
      %997 = vrot.lane.b32.xlu0 %v986, 23
      %v998 = vpop.permute.xlu0 %997
      %v999 = vrot.slane %v992, 4
      %v1000 = vrot.slane %v994, 4
      %v1001 = vrot.slane %v996, 4
      %v1002 = vrot.slane %v998, 4
      %v1003 = vsel %vm325, %v999, %v1000
      %v1004 = vsel %vm397, %v992, %v1003
      %v1005 = vsel %vm397, %v994, %v1000
      %v1006 = vsel %vm325, %v1001, %v1002
      %v1007 = vsel %vm397, %v996, %v1006
      %v1008 = vsel %vm397, %v998, %v1002
      %1013 = vst [vmem:[#allocation4 + $0x30] sm:$0xff] %v1004
      %1014 = vst [vmem:[#allocation4 + $0x38] sm:$0xf] %v1005
      %1015 = vst [vmem:[#allocation4 + $0x3c] sm:$0xff] %v1007
      %1016 = vst [vmem:[#allocation4 + $0x44] sm:$0xf] %v1008
      %v1017 = vld [vmem:[#allocation2] sm:$0xff]
      %v1018 = vld [vmem:[#allocation2 + $0x8] sm:$0xff]
      %v1019 = vld [vmem:[#allocation2 + $0x14] sm:$0xff]
      %v1020 = vld [vmem:[#allocation2 + $0x1c] sm:$0xff]
      %1025 = vrot.lane.b32.xlu0 %v1017, 1
      %v1026 = vpop.permute.xlu0 %1025
      %1027 = vrot.lane.b32.xlu0 %v1018, 1
      %v1028 = vpop.permute.xlu0 %1027
      %1029 = vrot.lane.b32.xlu0 %v1019, 1
      %v1030 = vpop.permute.xlu0 %1029
      %1031 = vrot.lane.b32.xlu0 %v1020, 1
      %v1032 = vpop.permute.xlu0 %1031
      %v1033 = vrot.slane %v1026, 4
      %v1034 = vrot.slane %v1028, 4
      %v1035 = vrot.slane %v1030, 4
      %v1036 = vrot.slane %v1032, 4
      %v1037 = vsel %vm325, %v1033, %v1034
      %v1038 = vsel %vm432, %v1026, %v1037
      %v1039 = vsel %vm432, %v1028, %v1034
      %v1040 = vsel %vm325, %v1035, %v1036
      %v1041 = vsel %vm432, %v1030, %v1040
      %v1042 = vsel %vm432, %v1032, %v1036
      %1047 = vst [vmem:[#allocation4 + $0x48] sm:$0xff] %v1038
      %1048 = vst [vmem:[#allocation4 + $0x50] sm:$0xf] %v1039
      %1049 = vst [vmem:[#allocation4 + $0x54] sm:$0xff] %v1041
      %1050 = vst [vmem:[#allocation4 + $0x5c] sm:$0xf] %v1042
      %v1051 = vld [vmem:[#allocation2 + $0x4] sm:$0xff]
      %v1052 = vld [vmem:[#allocation2 + $0xc] sm:$0xf]
      %v1053 = vld [vmem:[#allocation2 + $0x18] sm:$0xff]
      %v1054 = vld [vmem:[#allocation2 + $0x20] sm:$0xf]
      %1055 = vst [vmem:[#allocation4 + $0x60] sm:$0xff] %v1051
      %1056 = vst [vmem:[#allocation4 + $0x68] sm:$0xf] %v1052
      %1057 = vst [vmem:[#allocation4 + $0x6c] sm:$0xff] %v1053
      %1058 = vst [vmem:[#allocation4 + $0x74] sm:$0xf] %v1054
      %v1059 = vld [vmem:[#allocation2 + $0x4] sm:$0xff]
      %v1060 = vld [vmem:[#allocation2 + $0xc] sm:$0xff]
      %v1061 = vld [vmem:[#allocation2 + $0x18] sm:$0xff]
      %v1062 = vld [vmem:[#allocation2 + $0x20] sm:$0xff]
      %1067 = vrot.lane.b32.xlu0 %v1059, 127
      %v1068 = vpop.permute.xlu0 %1067
      %1069 = vrot.lane.b32.xlu0 %v1060, 127
      %v1070 = vpop.permute.xlu0 %1069
      %1071 = vrot.lane.b32.xlu0 %v1061, 127
      %v1072 = vpop.permute.xlu0 %1071
      %1073 = vrot.lane.b32.xlu0 %v1062, 127
      %v1074 = vpop.permute.xlu0 %1073
      %v1075 = vrot.slane %v1068, 4
      %v1076 = vrot.slane %v1070, 4
      %v1077 = vrot.slane %v1072, 4
      %v1078 = vrot.slane %v1074, 4
      %v1079 = vsel %vm325, %v1075, %v1076
      %v1080 = vsel %vm475, %v1068, %v1079
      %v1081 = vsel %vm475, %v1070, %v1076
      %v1082 = vsel %vm325, %v1077, %v1078
      %v1083 = vsel %vm475, %v1072, %v1082
      %v1084 = vsel %vm475, %v1074, %v1078
      %1089 = vst [vmem:[#allocation4 + $0x78] sm:$0xff] %v1080
      %1090 = vst [vmem:[#allocation4 + $0x80] sm:$0xf] %v1081
      %1091 = vst [vmem:[#allocation4 + $0x84] sm:$0xff] %v1083
      %1092 = vst [vmem:[#allocation4 + $0x8c] sm:$0xf] %v1084
      %v1093 = vld [vmem:[#allocation2 + $0x4] sm:$0xff]
      %v1094 = vld [vmem:[#allocation2 + $0xc] sm:$0xff]
      %v1095 = vld [vmem:[#allocation2 + $0x18] sm:$0xff]
      %v1096 = vld [vmem:[#allocation2 + $0x20] sm:$0xff]
      %1101 = vrot.lane.b32.xlu0 %v1093, 105
      %v1102 = vpop.permute.xlu0 %1101
      %1103 = vrot.lane.b32.xlu0 %v1094, 105
      %v1104 = vpop.permute.xlu0 %1103
      %1105 = vrot.lane.b32.xlu0 %v1095, 105
      %v1106 = vpop.permute.xlu0 %1105
      %1107 = vrot.lane.b32.xlu0 %v1096, 105
      %v1108 = vpop.permute.xlu0 %1107
      %v1109 = vrot.slane %v1102, 4
      %v1110 = vrot.slane %v1104, 4
      %v1111 = vrot.slane %v1106, 4
      %v1112 = vrot.slane %v1108, 4
      %v1113 = vsel %vm325, %v1109, %v1110
      %v1114 = vsel %vm510, %v1102, %v1113
      %v1115 = vsel %vm510, %v1104, %v1110
      %v1116 = vsel %vm325, %v1111, %v1112
      %v1117 = vsel %vm510, %v1106, %v1116
      %v1118 = vsel %vm510, %v1108, %v1112
      %1123 = vst [vmem:[#allocation4 + $0x90] sm:$0xff] %v1114
      %1124 = vst [vmem:[#allocation4 + $0x98] sm:$0xf] %v1115
      %1125 = vst [vmem:[#allocation4 + $0x9c] sm:$0xff] %v1117
      %1126 = vst [vmem:[#allocation4 + $0xa4] sm:$0xf] %v1118
      %v1127 = vld [vmem:[#allocation2 + $0x4] sm:$0xff]
      %v1128 = vld [vmem:[#allocation2 + $0xc] sm:$0xff]
      %v1129 = vld [vmem:[#allocation2 + $0x18] sm:$0xff]
      %v1130 = vld [vmem:[#allocation2 + $0x20] sm:$0xff]
      %1135 = vrot.lane.b32.xlu0 %v1127, 104
      %v1136 = vpop.permute.xlu0 %1135
      %1137 = vrot.lane.b32.xlu0 %v1128, 104
      %v1138 = vpop.permute.xlu0 %1137
      %1139 = vrot.lane.b32.xlu0 %v1129, 104
      %v1140 = vpop.permute.xlu0 %1139
      %1141 = vrot.lane.b32.xlu0 %v1130, 104
      %v1142 = vpop.permute.xlu0 %1141
      %v1143 = vrot.slane %v1136, 4
      %v1144 = vrot.slane %v1138, 4
      %v1145 = vrot.slane %v1140, 4
      %v1146 = vrot.slane %v1142, 4
      %v1147 = vsel %vm325, %v1143, %v1144
      %v1148 = vsel %vm545, %v1136, %v1147
      %v1149 = vsel %vm545, %v1138, %v1144
      %v1150 = vsel %vm325, %v1145, %v1146
      %v1151 = vsel %vm545, %v1140, %v1150
      %v1152 = vsel %vm545, %v1142, %v1146
      %1157 = vst [vmem:[#allocation4 + $0xa8] sm:$0xff] %v1148
      %1158 = vst [vmem:[#allocation4 + $0xb0] sm:$0xf] %v1149
      %1159 = vst [vmem:[#allocation4 + $0xb4] sm:$0xff] %v1151
      %1160 = vst [vmem:[#allocation4 + $0xbc] sm:$0xf] %v1152
      %v1161 = vld [vmem:[#allocation2 + $0x4] sm:$0xff]
      %v1162 = vld [vmem:[#allocation2 + $0xc] sm:$0xff]
      %v1163 = vld [vmem:[#allocation2 + $0x18] sm:$0xff]
      %v1164 = vld [vmem:[#allocation2 + $0x20] sm:$0xff]
      %1169 = vrot.lane.b32.xlu0 %v1161, 103
      %v1170 = vpop.permute.xlu0 %1169
      %1171 = vrot.lane.b32.xlu0 %v1162, 103
      %v1172 = vpop.permute.xlu0 %1171
      %1173 = vrot.lane.b32.xlu0 %v1163, 103
      %v1174 = vpop.permute.xlu0 %1173
      %1175 = vrot.lane.b32.xlu0 %v1164, 103
      %v1176 = vpop.permute.xlu0 %1175
      %v1177 = vrot.slane %v1170, 4
      %v1178 = vrot.slane %v1172, 4
      %v1179 = vrot.slane %v1174, 4
      %v1180 = vrot.slane %v1176, 4
      %v1181 = vsel %vm325, %v1177, %v1178
      %v1182 = vsel %vm580, %v1170, %v1181
      %v1183 = vsel %vm580, %v1172, %v1178
      %v1184 = vsel %vm325, %v1179, %v1180
      %v1185 = vsel %vm580, %v1174, %v1184
      %v1186 = vsel %vm580, %v1176, %v1180
      %1191 = vst [vmem:[#allocation4 + $0xc0] sm:$0xff] %v1182
      %1192 = vst [vmem:[#allocation4 + $0xc8] sm:$0xf] %v1183
      %1193 = vst [vmem:[#allocation4 + $0xcc] sm:$0xff] %v1185
      %1194 = vst [vmem:[#allocation4 + $0xd4] sm:$0xf] %v1186
      %v1195 = vld [vmem:[%s3] sm:$0xff]
      %v1196 = vld [vmem:[%s3 + $0x8] sm:$0xff]
      %v1197 = vld [vmem:[#allocation4] sm:$0xff]
      %v1198 = vld [vmem:[#allocation4 + $0x8] sm:$0xf]
      %v1199 = vld [vmem:[#allocation4 + $0xc] sm:$0xff]
      %v1200 = vld [vmem:[#allocation4 + $0x14] sm:$0xf]
      %v1201 = vld [vmem:[#allocation4 + $0x18] sm:$0xff]
      %v1202 = vld [vmem:[#allocation4 + $0x20] sm:$0xf]
      %v1203 = vld [vmem:[#allocation4 + $0x24] sm:$0xff]
      %v1204 = vld [vmem:[#allocation4 + $0x2c] sm:$0xf]
      %v1205 = vld [vmem:[#allocation4 + $0x30] sm:$0xff]
      %v1206 = vld [vmem:[#allocation4 + $0x38] sm:$0xf]
      %v1207 = vld [vmem:[#allocation4 + $0x3c] sm:$0xff]
      %v1208 = vld [vmem:[#allocation4 + $0x44] sm:$0xf]
      %v1209 = vld [vmem:[#allocation4 + $0x48] sm:$0xff]
      %v1210 = vld [vmem:[#allocation4 + $0x50] sm:$0xf]
      %v1211 = vld [vmem:[#allocation4 + $0x54] sm:$0xff]
      %v1212 = vld [vmem:[#allocation4 + $0x5c] sm:$0xf]
      %v1213 = vld [vmem:[#allocation4 + $0x60] sm:$0xff]
      %v1214 = vld [vmem:[#allocation4 + $0x68] sm:$0xf]
      %v1215 = vld [vmem:[#allocation4 + $0x6c] sm:$0xff]
      %v1216 = vld [vmem:[#allocation4 + $0x74] sm:$0xf]
      %v1217 = vld [vmem:[#allocation4 + $0x78] sm:$0xff]
      %v1218 = vld [vmem:[#allocation4 + $0x80] sm:$0xf]
      %v1219 = vld [vmem:[#allocation4 + $0x84] sm:$0xff]
      %v1220 = vld [vmem:[#allocation4 + $0x8c] sm:$0xf]
      %v1221 = vld [vmem:[#allocation4 + $0x90] sm:$0xff]
      %v1222 = vld [vmem:[#allocation4 + $0x98] sm:$0xf]
      %v1223 = vld [vmem:[#allocation4 + $0x9c] sm:$0xff]
      %v1224 = vld [vmem:[#allocation4 + $0xa4] sm:$0xf]
      %v1225 = vld [vmem:[#allocation4 + $0xa8] sm:$0xff]
      %v1226 = vld [vmem:[#allocation4 + $0xb0] sm:$0xf]
      %v1227 = vld [vmem:[#allocation4 + $0xb4] sm:$0xff]
      %v1228 = vld [vmem:[#allocation4 + $0xbc] sm:$0xf]
      %v1229 = vld [vmem:[#allocation4 + $0xc0] sm:$0xff]
      %v1230 = vld [vmem:[#allocation4 + $0xc8] sm:$0xf]
      %v1231 = vld [vmem:[#allocation4 + $0xcc] sm:$0xff]
      %v1232 = vld [vmem:[#allocation4 + $0xd4] sm:$0xf]
      %v1233 = vld [vmem:[%s4] sm:$0xff]
      %v1234 = vld [vmem:[%s4 + $0x8] sm:$0xff]
      %1236 = vset.pattern.permute.xlu0 0
      %1237 = vperm.xlu0 %1236, %v1233
      %v1238 = vpop.permute.xlu0 %1237
      %1241 = vset.pattern.permute.xlu0 0
      %1242 = vperm.xlu0 %1241, %v1234
      %v1243 = vpop.permute.xlu0 %1242
      %v1247 = vunpack.c.l.b16 %v1195
      %v1248 = vunpack.c.h.b16 %v1195
      %v1249 = vunpack.c.l.b16 %v1196
      %v1250 = vunpack.c.h.b16 %v1196
      %v1251 = vpack.c.b16 %v1249, %v1247
      %v1252 = vpack.c.b16 %v1250, %v1248
      %v1290 = vunpack.c.l.b16 %v1197
      %v1291 = vunpack.c.h.b16 %v1197
      %v1292 = vunpack.c.l.b16 %v1198
      %v1293 = vunpack.c.l.b16 %v1199
      %v1294 = vunpack.c.h.b16 %v1199
      %v1295 = vunpack.c.l.b16 %v1200
      %v1296 = vunpack.c.l.b16 %v1201
      %v1297 = vunpack.c.h.b16 %v1201
      %v1298 = vunpack.c.l.b16 %v1202
      %v1299 = vunpack.c.l.b16 %v1203
      %v1300 = vunpack.c.h.b16 %v1203
      %v1301 = vunpack.c.l.b16 %v1204
      %v1302 = vunpack.c.l.b16 %v1205
      %v1303 = vunpack.c.h.b16 %v1205
      %v1304 = vunpack.c.l.b16 %v1206
      %v1305 = vunpack.c.l.b16 %v1207
      %v1306 = vunpack.c.h.b16 %v1207
      %v1307 = vunpack.c.l.b16 %v1208
      %v1308 = vunpack.c.l.b16 %v1209
      %v1309 = vunpack.c.h.b16 %v1209
      %v1310 = vunpack.c.l.b16 %v1210
      %v1311 = vunpack.c.l.b16 %v1211
      %v1312 = vunpack.c.h.b16 %v1211
      %v1313 = vunpack.c.l.b16 %v1212
      %v1314 = vunpack.c.l.b16 %v1213
      %v1315 = vunpack.c.h.b16 %v1213
      %v1316 = vunpack.c.l.b16 %v1214
      %v1317 = vunpack.c.l.b16 %v1215
      %v1318 = vunpack.c.h.b16 %v1215
      %v1319 = vunpack.c.l.b16 %v1216
      %v1320 = vunpack.c.l.b16 %v1217
      %v1321 = vunpack.c.h.b16 %v1217
      %v1322 = vunpack.c.l.b16 %v1218
      %v1323 = vunpack.c.l.b16 %v1219
      %v1324 = vunpack.c.h.b16 %v1219
      %v1325 = vunpack.c.l.b16 %v1220
      %v1326 = vunpack.c.l.b16 %v1221
      %v1327 = vunpack.c.h.b16 %v1221
      %v1328 = vunpack.c.l.b16 %v1222
      %v1329 = vunpack.c.l.b16 %v1223
      %v1330 = vunpack.c.h.b16 %v1223
      %v1331 = vunpack.c.l.b16 %v1224
      %v1332 = vunpack.c.l.b16 %v1225
      %v1333 = vunpack.c.h.b16 %v1225
      %v1334 = vunpack.c.l.b16 %v1226
      %v1335 = vunpack.c.l.b16 %v1227
      %v1336 = vunpack.c.h.b16 %v1227
      %v1337 = vunpack.c.l.b16 %v1228
      %v1338 = vunpack.c.l.b16 %v1229
      %v1339 = vunpack.c.h.b16 %v1229
      %v1340 = vunpack.c.l.b16 %v1230
      %v1341 = vunpack.c.l.b16 %v1231
      %v1342 = vunpack.c.h.b16 %v1231
      %v1343 = vunpack.c.l.b16 %v1232
      %v1344 = vpack.c.b16 %v1293, %v1290
      %v1345 = vpack.c.b16 %v1294, %v1291
      %v1346 = vpack.c.b16 %v1295, %v1292
      %v1347 = vpack.c.b16 %v1299, %v1296
      %v1348 = vpack.c.b16 %v1300, %v1297
      %v1349 = vpack.c.b16 %v1301, %v1298
      %v1350 = vpack.c.b16 %v1305, %v1302
      %v1351 = vpack.c.b16 %v1306, %v1303
      %v1352 = vpack.c.b16 %v1307, %v1304
      %v1353 = vpack.c.b16 %v1311, %v1308
      %v1354 = vpack.c.b16 %v1312, %v1309
      %v1355 = vpack.c.b16 %v1313, %v1310
      %v1356 = vpack.c.b16 %v1317, %v1314
      %v1357 = vpack.c.b16 %v1318, %v1315
      %v1358 = vpack.c.b16 %v1319, %v1316
      %v1359 = vpack.c.b16 %v1323, %v1320
      %v1360 = vpack.c.b16 %v1324, %v1321
      %v1361 = vpack.c.b16 %v1325, %v1322
      %v1362 = vpack.c.b16 %v1329, %v1326
      %v1363 = vpack.c.b16 %v1330, %v1327
      %v1364 = vpack.c.b16 %v1331, %v1328
      %v1365 = vpack.c.b16 %v1335, %v1332
      %v1366 = vpack.c.b16 %v1336, %v1333
      %v1367 = vpack.c.b16 %v1337, %v1334
      %v1368 = vpack.c.b16 %v1341, %v1338
      %v1369 = vpack.c.b16 %v1342, %v1339
      %v1370 = vpack.c.b16 %v1343, %v1340
      %v1399 = vsel %vm797, %v1252, 0
      %1401 = vmatpush.bf16.msra.mxu0 %v1365
      %1402 = vmatpush.bf16.msra.mxu0 %v1362
      %1403 = vmatpush.bf16.msra.mxu0 %v1359
      %1404 = vmatpush.bf16.msra.mxu0 %v1356
      %1405 = vmatpush.bf16.msra.mxu0 %v1353
      %1406 = vmatpush.bf16.msra.mxu0 %v1350
      %1407 = vmatpush.bf16.msra.mxu0 %v1347
      %1408 = vmatpush.bf16.msra.mxu0 %v1344
      %1409 = vmatmul.bf16.gmra.mxu0 %v1251
      %v1410 = vpop.f32.mrf.mxu0
      %v1411 = vadd.f32 %v1238, %v1410
      %v1412 = vpop.f32.mrf.mxu0
      %v1413 = vadd.f32 %v1243, %v1412
      %1414 = vdwg.mxu0
      %1415 = vmatpush.bf16.msra.mxu0 0
      %1416 = vmatpush.bf16.msra.mxu0 0
      %1417 = vmatpush.bf16.msra.mxu0 0
      %1418 = vmatpush.bf16.msra.mxu0 0
      %1419 = vmatpush.bf16.msra.mxu0 0
      %1420 = vmatpush.bf16.msra.mxu0 0
      %1421 = vmatpush.bf16.msra.mxu0 0
      %1422 = vmatpush.bf16.msra.mxu0 %v1368
      %1423 = vmatmul.bf16.gmra.mxu0 %v1399
      %v1424 = vpop.f32.mrf.mxu0
      %v1425 = vadd.f32 %v1411, %v1424
      %v1426 = vpop.f32.mrf.mxu0
      %v1427 = vadd.f32 %v1413, %v1426
      %1428 = vdwg.mxu0
      %1429 = vmatpush.bf16.msra.mxu0 %v1366
      %1430 = vmatpush.bf16.msra.mxu0 %v1363
      %1431 = vmatpush.bf16.msra.mxu0 %v1360
      %1432 = vmatpush.bf16.msra.mxu0 %v1357
      %1433 = vmatpush.bf16.msra.mxu0 %v1354
      %1434 = vmatpush.bf16.msra.mxu0 %v1351
      %1435 = vmatpush.bf16.msra.mxu0 %v1348
      %1436 = vmatpush.bf16.msra.mxu0 %v1345
      %1437 = vmatmul.bf16.gmra.mxu0 %v1251
      %v1438 = vpop.f32.mrf.mxu0
      %v1439 = vadd.f32 %v1238, %v1438
      %v1440 = vpop.f32.mrf.mxu0
      %v1441 = vadd.f32 %v1243, %v1440
      %1442 = vdwg.mxu0
      %1443 = vmatpush.bf16.msra.mxu0 0
      %1444 = vmatpush.bf16.msra.mxu0 0
      %1445 = vmatpush.bf16.msra.mxu0 0
      %1446 = vmatpush.bf16.msra.mxu0 0
      %1447 = vmatpush.bf16.msra.mxu0 0
      %1448 = vmatpush.bf16.msra.mxu0 0
      %1449 = vmatpush.bf16.msra.mxu0 0
      %1450 = vmatpush.bf16.msra.mxu0 %v1369
      %1451 = vmatmul.bf16.gmra.mxu0 %v1399
      %v1452 = vpop.f32.mrf.mxu0
      %v1453 = vadd.f32 %v1439, %v1452
      %v1454 = vpop.f32.mrf.mxu0
      %v1455 = vadd.f32 %v1441, %v1454
      %1456 = vdwg.mxu0
      %1457 = vmatpush.bf16.msra.mxu0 %v1367
      %1458 = vmatpush.bf16.msra.mxu0 %v1364
      %1459 = vmatpush.bf16.msra.mxu0 %v1361
      %1460 = vmatpush.bf16.msra.mxu0 %v1358
      %1461 = vmatpush.bf16.msra.mxu0 %v1355
      %1462 = vmatpush.bf16.msra.mxu0 %v1352
      %1463 = vmatpush.bf16.msra.mxu0 %v1349
      %1464 = vmatpush.bf16.msra.mxu0 %v1346
      %1465 = vmatmul.bf16.gmra.mxu0 %v1251
      %v1466 = vpop.f32.mrf.mxu0
      %v1467 = vadd.f32 %v1238, %v1466
      %v1468 = vpop.f32.mrf.mxu0
      %v1469 = vadd.f32 %v1243, %v1468
      %1470 = vdwg.mxu0
      %1471 = vmatpush.bf16.msra.mxu0 0
      %1472 = vmatpush.bf16.msra.mxu0 0
      %1473 = vmatpush.bf16.msra.mxu0 0
      %1474 = vmatpush.bf16.msra.mxu0 0
      %1475 = vmatpush.bf16.msra.mxu0 0
      %1476 = vmatpush.bf16.msra.mxu0 0
      %1477 = vmatpush.bf16.msra.mxu0 0
      %1478 = vmatpush.bf16.msra.mxu0 %v1370
      %1479 = vmatmul.bf16.gmra.mxu0 %v1399
      %v1480 = vpop.f32.mrf.mxu0
      %v1481 = vadd.f32 %v1467, %v1480
      %v1482 = vpop.f32.mrf.mxu0
      %v1483 = vadd.f32 %v1469, %v1482
      %1484 = vdwg.mxu0
      %v1485 = vmax.f32 %v1425, 0.0
      %v1486 = vmax.f32 %v1453, 0.0
      %v1487 = vmax.f32 %v1481, 0.0
      %v1488 = vmax.f32 %v1427, 0.0
      %v1489 = vmax.f32 %v1455, 0.0
      %v1490 = vmax.f32 %v1483, 0.0
      %v1491 = vsel %vm894, %v1485, 0.0
      %v1492 = vsel %vm895, %v1486, 0.0
      %v1493 = vsel %vm896, %v1487, 0.0
      %v1494 = vsel %vm894, %v1488, 0.0
      %v1495 = vsel %vm895, %v1489, 0.0
      %v1496 = vsel %vm896, %v1490, 0.0
      %1497 = vst [vmem:[#allocation3] sm:$0xf] 0
      %1498 = vst [vmem:[#allocation3 + $0x14] sm:$0xf] 0
      %1499 = vst [vmem:[#allocation3 + $0x10] sm:$0xf] 0
      %1500 = vst [vmem:[#allocation3 + $0x24] sm:$0xf] 0
      %v1501 = vpack.c.bf16 %v1492, %v1491
      %v1502 = vpack.c.bf16 %v1493, %v1493
      %v1503 = vpack.c.bf16 %v1495, %v1494
      %v1504 = vpack.c.bf16 %v1496, %v1496
      %1505 = vst [vmem:[#allocation3 + $0x4] sm:$0xff] %v1501
      %1506 = vst [vmem:[#allocation3 + $0xc] sm:$0xf] %v1502
      %1507 = vst [vmem:[#allocation3 + $0x18] sm:$0xff] %v1503
      %1508 = vst [vmem:[#allocation3 + $0x20] sm:$0xf] %v1504
      %v1509 = vld [vmem:[#allocation3] sm:$0xff]
      %v1510 = vld [vmem:[#allocation3 + $0x8] sm:$0xff]
      %v1511 = vld [vmem:[#allocation3 + $0x14] sm:$0xff]
      %v1512 = vld [vmem:[#allocation3 + $0x1c] sm:$0xff]
      %1517 = vrot.lane.b32.xlu0 %v1509, 25
      %v1518 = vpop.permute.xlu0 %1517
      %1519 = vrot.lane.b32.xlu0 %v1510, 25
      %v1520 = vpop.permute.xlu0 %1519
      %1521 = vrot.lane.b32.xlu0 %v1511, 25
      %v1522 = vpop.permute.xlu0 %1521
      %1523 = vrot.lane.b32.xlu0 %v1512, 25
      %v1524 = vpop.permute.xlu0 %1523
      %v1525 = vrot.slane %v1518, 4
      %v1526 = vrot.slane %v1520, 4
      %v1527 = vrot.slane %v1522, 4
      %v1528 = vrot.slane %v1524, 4
      %v1529 = vsel %vm325, %v1525, %v1526
      %v1530 = vsel %vm327, %v1518, %v1529
      %v1531 = vsel %vm327, %v1520, %v1526
      %v1532 = vsel %vm325, %v1527, %v1528
      %v1533 = vsel %vm327, %v1522, %v1532
      %v1534 = vsel %vm327, %v1524, %v1528
      %1539 = vst [vmem:[#allocation4] sm:$0xff] %v1530
      %1540 = vst [vmem:[#allocation4 + $0x8] sm:$0xf] %v1531
      %1541 = vst [vmem:[#allocation4 + $0xc] sm:$0xff] %v1533
      %1542 = vst [vmem:[#allocation4 + $0x14] sm:$0xf] %v1534
      %v1543 = vld [vmem:[#allocation3] sm:$0xff]
      %v1544 = vld [vmem:[#allocation3 + $0x8] sm:$0xff]
      %v1545 = vld [vmem:[#allocation3 + $0x14] sm:$0xff]
      %v1546 = vld [vmem:[#allocation3 + $0x1c] sm:$0xff]
      %1551 = vrot.lane.b32.xlu0 %v1543, 24
      %v1552 = vpop.permute.xlu0 %1551
      %1553 = vrot.lane.b32.xlu0 %v1544, 24
      %v1554 = vpop.permute.xlu0 %1553
      %1555 = vrot.lane.b32.xlu0 %v1545, 24
      %v1556 = vpop.permute.xlu0 %1555
      %1557 = vrot.lane.b32.xlu0 %v1546, 24
      %v1558 = vpop.permute.xlu0 %1557
      %v1559 = vrot.slane %v1552, 4
      %v1560 = vrot.slane %v1554, 4
      %v1561 = vrot.slane %v1556, 4
      %v1562 = vrot.slane %v1558, 4
      %v1563 = vsel %vm325, %v1559, %v1560
      %v1564 = vsel %vm362, %v1552, %v1563
      %v1565 = vsel %vm362, %v1554, %v1560
      %v1566 = vsel %vm325, %v1561, %v1562
      %v1567 = vsel %vm362, %v1556, %v1566
      %v1568 = vsel %vm362, %v1558, %v1562
      %1573 = vst [vmem:[#allocation4 + $0x18] sm:$0xff] %v1564
      %1574 = vst [vmem:[#allocation4 + $0x20] sm:$0xf] %v1565
      %1575 = vst [vmem:[#allocation4 + $0x24] sm:$0xff] %v1567
      %1576 = vst [vmem:[#allocation4 + $0x2c] sm:$0xf] %v1568
      %v1577 = vld [vmem:[#allocation3] sm:$0xff]
      %v1578 = vld [vmem:[#allocation3 + $0x8] sm:$0xff]
      %v1579 = vld [vmem:[#allocation3 + $0x14] sm:$0xff]
      %v1580 = vld [vmem:[#allocation3 + $0x1c] sm:$0xff]
      %1585 = vrot.lane.b32.xlu0 %v1577, 23
      %v1586 = vpop.permute.xlu0 %1585
      %1587 = vrot.lane.b32.xlu0 %v1578, 23
      %v1588 = vpop.permute.xlu0 %1587
      %1589 = vrot.lane.b32.xlu0 %v1579, 23
      %v1590 = vpop.permute.xlu0 %1589
      %1591 = vrot.lane.b32.xlu0 %v1580, 23
      %v1592 = vpop.permute.xlu0 %1591
      %v1593 = vrot.slane %v1586, 4
      %v1594 = vrot.slane %v1588, 4
      %v1595 = vrot.slane %v1590, 4
      %v1596 = vrot.slane %v1592, 4
      %v1597 = vsel %vm325, %v1593, %v1594
      %v1598 = vsel %vm397, %v1586, %v1597
      %v1599 = vsel %vm397, %v1588, %v1594
      %v1600 = vsel %vm325, %v1595, %v1596
      %v1601 = vsel %vm397, %v1590, %v1600
      %v1602 = vsel %vm397, %v1592, %v1596
      %1607 = vst [vmem:[#allocation4 + $0x30] sm:$0xff] %v1598
      %1608 = vst [vmem:[#allocation4 + $0x38] sm:$0xf] %v1599
      %1609 = vst [vmem:[#allocation4 + $0x3c] sm:$0xff] %v1601
      %1610 = vst [vmem:[#allocation4 + $0x44] sm:$0xf] %v1602
      %v1611 = vld [vmem:[#allocation3] sm:$0xff]
      %v1612 = vld [vmem:[#allocation3 + $0x8] sm:$0xff]
      %v1613 = vld [vmem:[#allocation3 + $0x14] sm:$0xff]
      %v1614 = vld [vmem:[#allocation3 + $0x1c] sm:$0xff]
      %1619 = vrot.lane.b32.xlu0 %v1611, 1
      %v1620 = vpop.permute.xlu0 %1619
      %1621 = vrot.lane.b32.xlu0 %v1612, 1
      %v1622 = vpop.permute.xlu0 %1621
      %1623 = vrot.lane.b32.xlu0 %v1613, 1
      %v1624 = vpop.permute.xlu0 %1623
      %1625 = vrot.lane.b32.xlu0 %v1614, 1
      %v1626 = vpop.permute.xlu0 %1625
      %v1627 = vrot.slane %v1620, 4
      %v1628 = vrot.slane %v1622, 4
      %v1629 = vrot.slane %v1624, 4
      %v1630 = vrot.slane %v1626, 4
      %v1631 = vsel %vm325, %v1627, %v1628
      %v1632 = vsel %vm432, %v1620, %v1631
      %v1633 = vsel %vm432, %v1622, %v1628
      %v1634 = vsel %vm325, %v1629, %v1630
      %v1635 = vsel %vm432, %v1624, %v1634
      %v1636 = vsel %vm432, %v1626, %v1630
      %1641 = vst [vmem:[#allocation4 + $0x48] sm:$0xff] %v1632
      %1642 = vst [vmem:[#allocation4 + $0x50] sm:$0xf] %v1633
      %1643 = vst [vmem:[#allocation4 + $0x54] sm:$0xff] %v1635
      %1644 = vst [vmem:[#allocation4 + $0x5c] sm:$0xf] %v1636
      %v1645 = vld [vmem:[#allocation3 + $0x4] sm:$0xff]
      %v1646 = vld [vmem:[#allocation3 + $0xc] sm:$0xf]
      %v1647 = vld [vmem:[#allocation3 + $0x18] sm:$0xff]
      %v1648 = vld [vmem:[#allocation3 + $0x20] sm:$0xf]
      %1649 = vst [vmem:[#allocation4 + $0x60] sm:$0xff] %v1645
      %1650 = vst [vmem:[#allocation4 + $0x68] sm:$0xf] %v1646
      %1651 = vst [vmem:[#allocation4 + $0x6c] sm:$0xff] %v1647
      %1652 = vst [vmem:[#allocation4 + $0x74] sm:$0xf] %v1648
      %v1653 = vld [vmem:[#allocation3 + $0x4] sm:$0xff]
      %v1654 = vld [vmem:[#allocation3 + $0xc] sm:$0xff]
      %v1655 = vld [vmem:[#allocation3 + $0x18] sm:$0xff]
      %v1656 = vld [vmem:[#allocation3 + $0x20] sm:$0xff]
      %1661 = vrot.lane.b32.xlu0 %v1653, 127
      %v1662 = vpop.permute.xlu0 %1661
      %1663 = vrot.lane.b32.xlu0 %v1654, 127
      %v1664 = vpop.permute.xlu0 %1663
      %1665 = vrot.lane.b32.xlu0 %v1655, 127
      %v1666 = vpop.permute.xlu0 %1665
      %1667 = vrot.lane.b32.xlu0 %v1656, 127
      %v1668 = vpop.permute.xlu0 %1667
      %v1669 = vrot.slane %v1662, 4
      %v1670 = vrot.slane %v1664, 4
      %v1671 = vrot.slane %v1666, 4
      %v1672 = vrot.slane %v1668, 4
      %v1673 = vsel %vm325, %v1669, %v1670
      %v1674 = vsel %vm475, %v1662, %v1673
      %v1675 = vsel %vm475, %v1664, %v1670
      %v1676 = vsel %vm325, %v1671, %v1672
      %v1677 = vsel %vm475, %v1666, %v1676
      %v1678 = vsel %vm475, %v1668, %v1672
      %1683 = vst [vmem:[#allocation4 + $0x78] sm:$0xff] %v1674
      %1684 = vst [vmem:[#allocation4 + $0x80] sm:$0xf] %v1675
      %1685 = vst [vmem:[#allocation4 + $0x84] sm:$0xff] %v1677
      %1686 = vst [vmem:[#allocation4 + $0x8c] sm:$0xf] %v1678
      %v1687 = vld [vmem:[#allocation3 + $0x4] sm:$0xff]
      %v1688 = vld [vmem:[#allocation3 + $0xc] sm:$0xff]
      %v1689 = vld [vmem:[#allocation3 + $0x18] sm:$0xff]
      %v1690 = vld [vmem:[#allocation3 + $0x20] sm:$0xff]
      %1695 = vrot.lane.b32.xlu0 %v1687, 105
      %v1696 = vpop.permute.xlu0 %1695
      %1697 = vrot.lane.b32.xlu0 %v1688, 105
      %v1698 = vpop.permute.xlu0 %1697
      %1699 = vrot.lane.b32.xlu0 %v1689, 105
      %v1700 = vpop.permute.xlu0 %1699
      %1701 = vrot.lane.b32.xlu0 %v1690, 105
      %v1702 = vpop.permute.xlu0 %1701
      %v1703 = vrot.slane %v1696, 4
      %v1704 = vrot.slane %v1698, 4
      %v1705 = vrot.slane %v1700, 4
      %v1706 = vrot.slane %v1702, 4
      %v1707 = vsel %vm325, %v1703, %v1704
      %v1708 = vsel %vm510, %v1696, %v1707
      %v1709 = vsel %vm510, %v1698, %v1704
      %v1710 = vsel %vm325, %v1705, %v1706
      %v1711 = vsel %vm510, %v1700, %v1710
      %v1712 = vsel %vm510, %v1702, %v1706
      %1717 = vst [vmem:[#allocation4 + $0x90] sm:$0xff] %v1708
      %1718 = vst [vmem:[#allocation4 + $0x98] sm:$0xf] %v1709
      %1719 = vst [vmem:[#allocation4 + $0x9c] sm:$0xff] %v1711
      %1720 = vst [vmem:[#allocation4 + $0xa4] sm:$0xf] %v1712
      %v1721 = vld [vmem:[#allocation3 + $0x4] sm:$0xff]
      %v1722 = vld [vmem:[#allocation3 + $0xc] sm:$0xff]
      %v1723 = vld [vmem:[#allocation3 + $0x18] sm:$0xff]
      %v1724 = vld [vmem:[#allocation3 + $0x20] sm:$0xff]
      %1729 = vrot.lane.b32.xlu0 %v1721, 104
      %v1730 = vpop.permute.xlu0 %1729
      %1731 = vrot.lane.b32.xlu0 %v1722, 104
      %v1732 = vpop.permute.xlu0 %1731
      %1733 = vrot.lane.b32.xlu0 %v1723, 104
      %v1734 = vpop.permute.xlu0 %1733
      %1735 = vrot.lane.b32.xlu0 %v1724, 104
      %v1736 = vpop.permute.xlu0 %1735
      %v1737 = vrot.slane %v1730, 4
      %v1738 = vrot.slane %v1732, 4
      %v1739 = vrot.slane %v1734, 4
      %v1740 = vrot.slane %v1736, 4
      %v1741 = vsel %vm325, %v1737, %v1738
      %v1742 = vsel %vm545, %v1730, %v1741
      %v1743 = vsel %vm545, %v1732, %v1738
      %v1744 = vsel %vm325, %v1739, %v1740
      %v1745 = vsel %vm545, %v1734, %v1744
      %v1746 = vsel %vm545, %v1736, %v1740
      %1751 = vst [vmem:[#allocation4 + $0xa8] sm:$0xff] %v1742
      %1752 = vst [vmem:[#allocation4 + $0xb0] sm:$0xf] %v1743
      %1753 = vst [vmem:[#allocation4 + $0xb4] sm:$0xff] %v1745
      %1754 = vst [vmem:[#allocation4 + $0xbc] sm:$0xf] %v1746
      %v1755 = vld [vmem:[#allocation3 + $0x4] sm:$0xff]
      %v1756 = vld [vmem:[#allocation3 + $0xc] sm:$0xff]
      %v1757 = vld [vmem:[#allocation3 + $0x18] sm:$0xff]
      %v1758 = vld [vmem:[#allocation3 + $0x20] sm:$0xff]
      %1763 = vrot.lane.b32.xlu0 %v1755, 103
      %v1764 = vpop.permute.xlu0 %1763
      %1765 = vrot.lane.b32.xlu0 %v1756, 103
      %v1766 = vpop.permute.xlu0 %1765
      %1767 = vrot.lane.b32.xlu0 %v1757, 103
      %v1768 = vpop.permute.xlu0 %1767
      %1769 = vrot.lane.b32.xlu0 %v1758, 103
      %v1770 = vpop.permute.xlu0 %1769
      %v1771 = vrot.slane %v1764, 4
      %v1772 = vrot.slane %v1766, 4
      %v1773 = vrot.slane %v1768, 4
      %v1774 = vrot.slane %v1770, 4
      %v1775 = vsel %vm325, %v1771, %v1772
      %v1776 = vsel %vm580, %v1764, %v1775
      %v1777 = vsel %vm580, %v1766, %v1772
      %v1778 = vsel %vm325, %v1773, %v1774
      %v1779 = vsel %vm580, %v1768, %v1778
      %v1780 = vsel %vm580, %v1770, %v1774
      %1785 = vst [vmem:[#allocation4 + $0xc0] sm:$0xff] %v1776
      %1786 = vst [vmem:[#allocation4 + $0xc8] sm:$0xf] %v1777
      %1787 = vst [vmem:[#allocation4 + $0xcc] sm:$0xff] %v1779
      %1788 = vst [vmem:[#allocation4 + $0xd4] sm:$0xf] %v1780
      %v1789 = vld [vmem:[%s5] sm:$0xff]
      %v1790 = vld [vmem:[#allocation4] sm:$0xff]
      %v1791 = vld [vmem:[#allocation4 + $0x8] sm:$0xf]
      %v1792 = vld [vmem:[#allocation4 + $0xc] sm:$0xff]
      %v1793 = vld [vmem:[#allocation4 + $0x14] sm:$0xf]
      %v1794 = vld [vmem:[#allocation4 + $0x18] sm:$0xff]
      %v1795 = vld [vmem:[#allocation4 + $0x20] sm:$0xf]
      %v1796 = vld [vmem:[#allocation4 + $0x24] sm:$0xff]
      %v1797 = vld [vmem:[#allocation4 + $0x2c] sm:$0xf]
      %v1798 = vld [vmem:[#allocation4 + $0x30] sm:$0xff]
      %v1799 = vld [vmem:[#allocation4 + $0x38] sm:$0xf]
      %v1800 = vld [vmem:[#allocation4 + $0x3c] sm:$0xff]
      %v1801 = vld [vmem:[#allocation4 + $0x44] sm:$0xf]
      %v1802 = vld [vmem:[#allocation4 + $0x48] sm:$0xff]
      %v1803 = vld [vmem:[#allocation4 + $0x50] sm:$0xf]
      %v1804 = vld [vmem:[#allocation4 + $0x54] sm:$0xff]
      %v1805 = vld [vmem:[#allocation4 + $0x5c] sm:$0xf]
      %v1806 = vld [vmem:[#allocation4 + $0x60] sm:$0xff]
      %v1807 = vld [vmem:[#allocation4 + $0x68] sm:$0xf]
      %v1808 = vld [vmem:[#allocation4 + $0x6c] sm:$0xff]
      %v1809 = vld [vmem:[#allocation4 + $0x74] sm:$0xf]
      %v1810 = vld [vmem:[#allocation4 + $0x78] sm:$0xff]
      %v1811 = vld [vmem:[#allocation4 + $0x80] sm:$0xf]
      %v1812 = vld [vmem:[#allocation4 + $0x84] sm:$0xff]
      %v1813 = vld [vmem:[#allocation4 + $0x8c] sm:$0xf]
      %v1814 = vld [vmem:[#allocation4 + $0x90] sm:$0xff]
      %v1815 = vld [vmem:[#allocation4 + $0x98] sm:$0xf]
      %v1816 = vld [vmem:[#allocation4 + $0x9c] sm:$0xff]
      %v1817 = vld [vmem:[#allocation4 + $0xa4] sm:$0xf]
      %v1818 = vld [vmem:[#allocation4 + $0xa8] sm:$0xff]
      %v1819 = vld [vmem:[#allocation4 + $0xb0] sm:$0xf]
      %v1820 = vld [vmem:[#allocation4 + $0xb4] sm:$0xff]
      %v1821 = vld [vmem:[#allocation4 + $0xbc] sm:$0xf]
      %v1822 = vld [vmem:[#allocation4 + $0xc0] sm:$0xff]
      %v1823 = vld [vmem:[#allocation4 + $0xc8] sm:$0xf]
      %v1824 = vld [vmem:[#allocation4 + $0xcc] sm:$0xff]
      %v1825 = vld [vmem:[#allocation4 + $0xd4] sm:$0xf]
      %v1827 = vunpack.c.l.b16 %v1789
      %v1828 = vunpack.c.h.b16 %v1789
      %v1829 = vpack.c.b16 %v1827, %v1827
      %v1830 = vpack.c.b16 %v1828, %v1828
      %v1868 = vunpack.c.l.b16 %v1790
      %v1869 = vunpack.c.h.b16 %v1790
      %v1870 = vunpack.c.l.b16 %v1791
      %v1871 = vunpack.c.l.b16 %v1792
      %v1872 = vunpack.c.h.b16 %v1792
      %v1873 = vunpack.c.l.b16 %v1793
      %v1874 = vunpack.c.l.b16 %v1794
      %v1875 = vunpack.c.h.b16 %v1794
      %v1876 = vunpack.c.l.b16 %v1795
      %v1877 = vunpack.c.l.b16 %v1796
      %v1878 = vunpack.c.h.b16 %v1796
      %v1879 = vunpack.c.l.b16 %v1797
      %v1880 = vunpack.c.l.b16 %v1798
      %v1881 = vunpack.c.h.b16 %v1798
      %v1882 = vunpack.c.l.b16 %v1799
      %v1883 = vunpack.c.l.b16 %v1800
      %v1884 = vunpack.c.h.b16 %v1800
      %v1885 = vunpack.c.l.b16 %v1801
      %v1886 = vunpack.c.l.b16 %v1802
      %v1887 = vunpack.c.h.b16 %v1802
      %v1888 = vunpack.c.l.b16 %v1803
      %v1889 = vunpack.c.l.b16 %v1804
      %v1890 = vunpack.c.h.b16 %v1804
      %v1891 = vunpack.c.l.b16 %v1805
      %v1892 = vunpack.c.l.b16 %v1806
      %v1893 = vunpack.c.h.b16 %v1806
      %v1894 = vunpack.c.l.b16 %v1807
      %v1895 = vunpack.c.l.b16 %v1808
      %v1896 = vunpack.c.h.b16 %v1808
      %v1897 = vunpack.c.l.b16 %v1809
      %v1898 = vunpack.c.l.b16 %v1810
      %v1899 = vunpack.c.h.b16 %v1810
      %v1900 = vunpack.c.l.b16 %v1811
      %v1901 = vunpack.c.l.b16 %v1812
      %v1902 = vunpack.c.h.b16 %v1812
      %v1903 = vunpack.c.l.b16 %v1813
      %v1904 = vunpack.c.l.b16 %v1814
      %v1905 = vunpack.c.h.b16 %v1814
      %v1906 = vunpack.c.l.b16 %v1815
      %v1907 = vunpack.c.l.b16 %v1816
      %v1908 = vunpack.c.h.b16 %v1816
      %v1909 = vunpack.c.l.b16 %v1817
      %v1910 = vunpack.c.l.b16 %v1818
      %v1911 = vunpack.c.h.b16 %v1818
      %v1912 = vunpack.c.l.b16 %v1819
      %v1913 = vunpack.c.l.b16 %v1820
      %v1914 = vunpack.c.h.b16 %v1820
      %v1915 = vunpack.c.l.b16 %v1821
      %v1916 = vunpack.c.l.b16 %v1822
      %v1917 = vunpack.c.h.b16 %v1822
      %v1918 = vunpack.c.l.b16 %v1823
      %v1919 = vunpack.c.l.b16 %v1824
      %v1920 = vunpack.c.h.b16 %v1824
      %v1921 = vunpack.c.l.b16 %v1825
      %v1922 = vpack.c.b16 %v1871, %v1868
      %v1923 = vpack.c.b16 %v1872, %v1869
      %v1924 = vpack.c.b16 %v1873, %v1870
      %v1925 = vpack.c.b16 %v1877, %v1874
      %v1926 = vpack.c.b16 %v1878, %v1875
      %v1927 = vpack.c.b16 %v1879, %v1876
      %v1928 = vpack.c.b16 %v1883, %v1880
      %v1929 = vpack.c.b16 %v1884, %v1881
      %v1930 = vpack.c.b16 %v1885, %v1882
      %v1931 = vpack.c.b16 %v1889, %v1886
      %v1932 = vpack.c.b16 %v1890, %v1887
      %v1933 = vpack.c.b16 %v1891, %v1888
      %v1934 = vpack.c.b16 %v1895, %v1892
      %v1935 = vpack.c.b16 %v1896, %v1893
      %v1936 = vpack.c.b16 %v1897, %v1894
      %v1937 = vpack.c.b16 %v1901, %v1898
      %v1938 = vpack.c.b16 %v1902, %v1899
      %v1939 = vpack.c.b16 %v1903, %v1900
      %v1940 = vpack.c.b16 %v1907, %v1904
      %v1941 = vpack.c.b16 %v1908, %v1905
      %v1942 = vpack.c.b16 %v1909, %v1906
      %v1943 = vpack.c.b16 %v1913, %v1910
      %v1944 = vpack.c.b16 %v1914, %v1911
      %v1945 = vpack.c.b16 %v1915, %v1912
      %v1946 = vpack.c.b16 %v1919, %v1916
      %v1947 = vpack.c.b16 %v1920, %v1917
      %v1948 = vpack.c.b16 %v1921, %v1918
      %v1977 = vsel %vm797, %v1830, 0
      %1979 = vmatpush.bf16.msra.mxu0 %v1943
      %1980 = vmatpush.bf16.msra.mxu0 %v1940
      %1981 = vmatpush.bf16.msra.mxu0 %v1937
      %1982 = vmatpush.bf16.msra.mxu0 %v1934
      %1983 = vmatpush.bf16.msra.mxu0 %v1931
      %1984 = vmatpush.bf16.msra.mxu0 %v1928
      %1985 = vmatpush.bf16.msra.mxu0 %v1925
      %1986 = vmatpush.bf16.msra.mxu0 %v1922
      %1987 = vmatmul.bf16.gmra.mxu0 %v1829
      %v1988 = vpop.f32.mrf.mxu0
      %v1989 = vadd.f32 0.0, %v1988
      %v1990 = vpop.f32.mrf.mxu0
      %1991 = vdwg.mxu0
      %1992 = vmatpush.bf16.msra.mxu0 0
      %1993 = vmatpush.bf16.msra.mxu0 0
      %1994 = vmatpush.bf16.msra.mxu0 0
      %1995 = vmatpush.bf16.msra.mxu0 0
      %1996 = vmatpush.bf16.msra.mxu0 0
      %1997 = vmatpush.bf16.msra.mxu0 0
      %1998 = vmatpush.bf16.msra.mxu0 0
      %1999 = vmatpush.bf16.msra.mxu0 %v1946
      %2000 = vmatmul.bf16.gmra.mxu0 %v1977
      %v2001 = vpop.f32.mrf.mxu0
      %v2002 = vadd.f32 %v1989, %v2001
      %v2003 = vpop.f32.mrf.mxu0
      %2004 = vdwg.mxu0
      %2005 = vmatpush.bf16.msra.mxu0 %v1944
      %2006 = vmatpush.bf16.msra.mxu0 %v1941
      %2007 = vmatpush.bf16.msra.mxu0 %v1938
      %2008 = vmatpush.bf16.msra.mxu0 %v1935
      %2009 = vmatpush.bf16.msra.mxu0 %v1932
      %2010 = vmatpush.bf16.msra.mxu0 %v1929
      %2011 = vmatpush.bf16.msra.mxu0 %v1926
      %2012 = vmatpush.bf16.msra.mxu0 %v1923
      %2013 = vmatmul.bf16.gmra.mxu0 %v1829
      %v2014 = vpop.f32.mrf.mxu0
      %v2015 = vadd.f32 0.0, %v2014
      %v2016 = vpop.f32.mrf.mxu0
      %2017 = vdwg.mxu0
      %2018 = vmatpush.bf16.msra.mxu0 0
      %2019 = vmatpush.bf16.msra.mxu0 0
      %2020 = vmatpush.bf16.msra.mxu0 0
      %2021 = vmatpush.bf16.msra.mxu0 0
      %2022 = vmatpush.bf16.msra.mxu0 0
      %2023 = vmatpush.bf16.msra.mxu0 0
      %2024 = vmatpush.bf16.msra.mxu0 0
      %2025 = vmatpush.bf16.msra.mxu0 %v1947
      %2026 = vmatmul.bf16.gmra.mxu0 %v1977
      %v2027 = vpop.f32.mrf.mxu0
      %v2028 = vadd.f32 %v2015, %v2027
      %v2029 = vpop.f32.mrf.mxu0
      %2030 = vdwg.mxu0
      %2031 = vmatpush.bf16.msra.mxu0 %v1945
      %2032 = vmatpush.bf16.msra.mxu0 %v1942
      %2033 = vmatpush.bf16.msra.mxu0 %v1939
      %2034 = vmatpush.bf16.msra.mxu0 %v1936
      %2035 = vmatpush.bf16.msra.mxu0 %v1933
      %2036 = vmatpush.bf16.msra.mxu0 %v1930
      %2037 = vmatpush.bf16.msra.mxu0 %v1927
      %2038 = vmatpush.bf16.msra.mxu0 %v1924
      %2039 = vmatmul.bf16.gmra.mxu0 %v1829
      %v2040 = vpop.f32.mrf.mxu0
      %v2041 = vadd.f32 0.0, %v2040
      %v2042 = vpop.f32.mrf.mxu0
      %2043 = vdwg.mxu0
      %2044 = vmatpush.bf16.msra.mxu0 0
      %2045 = vmatpush.bf16.msra.mxu0 0
      %2046 = vmatpush.bf16.msra.mxu0 0
      %2047 = vmatpush.bf16.msra.mxu0 0
      %2048 = vmatpush.bf16.msra.mxu0 0
      %2049 = vmatpush.bf16.msra.mxu0 0
      %2050 = vmatpush.bf16.msra.mxu0 0
      %2051 = vmatpush.bf16.msra.mxu0 %v1948
      %2052 = vmatmul.bf16.gmra.mxu0 %v1977
      %v2053 = vpop.f32.mrf.mxu0
      %v2054 = vadd.f32 %v2041, %v2053
      %v2055 = vpop.f32.mrf.mxu0
      %2056 = vdwg.mxu0
      %v2057 = vld [vmem:[#allocation5] sm:$0x1]
      %2059 = vset.pattern.permute.xlu0 0
      %2060 = vperm.xlu0 %2059, %v2057
      %v2061 = vpop.permute.xlu0 %2060
      %v2063 = vperm.slane %v2061, 0
      %v2064 = vadd.f32 %v2002, %v2063
      %v2065 = vadd.f32 %v2028, %v2063
      %v2066 = vadd.f32 %v2054, %v2063
      %v2067 = vxor.u32 %v2064, 2147483648
      %v2068 = vxor.u32 %v2065, 2147483648
      %v2069 = vxor.u32 %v2066, 2147483648
      %v2070 = vmul.f32 %v2067, 1.442695
      %v2071 = vpow.pop %v2070
      %v2072 = vmul.f32 %v2068, 1.442695
      %v2073 = vpow.pop %v2072
      %v2074 = vmul.f32 %v2069, 1.442695
      %v2075 = vpow.pop %v2074
      %v2076 = vadd.f32 %v2071, 1.0
      %v2077 = vadd.f32 %v2073, 1.0
      %v2078 = vadd.f32 %v2075, 1.0
      %v2079 = vrcp.pop %v2076
      %v2080 = vmul.f32 %v2076, %v2079
      %v2081 = vsub.f32 1.0, %v2080
      %v2082 = vmul.f32 %v2079, %v2081
      %v2083 = vadd.f32 %v2079, %v2082
      %vm2084 = vweird.f32 %v2076
      %vm2085 = vweird.f32 %v2079
      %vm2086 = vmor %vm2084, %vm2085
      %v2087 = vsel %vm2086, %v2079, %v2083
      %v2088 = vand.u32 2147483647, %v2076
      %vm2089 = vcmp.eq.f32.partialorder %v2088, 8.507059e+37
      %v2090 = vand.u32 %v2076, 2147483648
      %v2091 = vor.u32 1.1754944e-38, %v2090
      %v2092 = vsel %vm2089, %v2091, %v2087
      %v2093 = vmul.f32 1.0, %v2092
      %v2094 = vrcp.pop %v2077
      %v2095 = vmul.f32 %v2077, %v2094
      %v2096 = vsub.f32 1.0, %v2095
      %v2097 = vmul.f32 %v2094, %v2096
      %v2098 = vadd.f32 %v2094, %v2097
      %vm2099 = vweird.f32 %v2077
      %vm2100 = vweird.f32 %v2094
      %vm2101 = vmor %vm2099, %vm2100
      %v2102 = vsel %vm2101, %v2094, %v2098
      %v2103 = vand.u32 2147483647, %v2077
      %vm2104 = vcmp.eq.f32.partialorder %v2103, 8.507059e+37
      %v2105 = vand.u32 %v2077, 2147483648
      %v2106 = vor.u32 1.1754944e-38, %v2105
      %v2107 = vsel %vm2104, %v2106, %v2102
      %v2108 = vmul.f32 1.0, %v2107
      %v2109 = vrcp.pop %v2078
      %v2110 = vmul.f32 %v2078, %v2109
      %v2111 = vsub.f32 1.0, %v2110
      %v2112 = vmul.f32 %v2109, %v2111
      %v2113 = vadd.f32 %v2109, %v2112
      %vm2114 = vweird.f32 %v2078
      %vm2115 = vweird.f32 %v2109
      %vm2116 = vmor %vm2114, %vm2115
      %v2117 = vsel %vm2116, %v2109, %v2113
      %v2118 = vand.u32 2147483647, %v2078
      %vm2119 = vcmp.eq.f32.partialorder %v2118, 8.507059e+37
      %v2120 = vand.u32 %v2078, 2147483648
      %v2121 = vor.u32 1.1754944e-38, %v2120
      %v2122 = vsel %vm2119, %v2121, %v2117
      %v2123 = vmul.f32 1.0, %v2122
      %v2127 = vrot.slane %v2108, 7
      %v2128 = vrot.slane %v2123, 6
      %vm2129 = vcmask 1040384
      %v2130 = vsel %vm2129, %v2093, %v2127
      %vm2131 = vcmask 1041408
      %v2132 = vsel %vm2131, %v2130, %v2128
      %v2134 = vlaneseq
      %vm2135 = vcmp.ge.s32.totalorder %v2134, 0
      %vm2136 = vcmp.lt.s32.totalorder %v2134, 384
      %vm2137 = vmand %vm2135, %vm2136
      %2138 = vst.msk [vmem:[%s278] sm:$0x7] %vm2137, %v2132
      %p2139 = scmp.lt.s32.totalorder %s20, 1
      %s2140 = scalar_select %p2139, %s20, 1
      %s2141 = smul.addr %s2140, 3
      %s2142 = scalar_lea.vmem %s7, %s2141
      // Predicated region
      $region49: #{simple_depth_net.1} parent=47 // pred_check
        %p2143 = pneg %p190
      $region50: #{simple_depth_net.1} parent=47 // pred_check_branch
        %2145 = sbr.rel (%p2143) target = $region52
      $region51: #{simple_depth_net.1} parent=47 // pred_region
        _
      $region52: #{simple_depth_net.1} parent=47 // pred_fallthru
        _
    $region48: #{simple_depth_net.1} parent=5 // pred_fallthru
      _
    %p2146 = scmp.le.s32.totalorder 2, %s15
    // Predicated region
    $region53: #{simple_depth_net.1} parent=5 // pred_check
      %p2147 = pneg %p2146
    $region54: #{simple_depth_net.1} parent=5 // pred_check_branch
      %2149 = sbr.rel (%p2147) target = $region56
    $region55: #{simple_depth_net.1} parent=5 // pred_region
      %s2150 = ssub.s32 %s15, 2
      // Predicated region
      $region57: #{simple_depth_net.1} parent=55 // pred_check
        %p2151 = pneg %p196
      $region58: #{simple_depth_net.1} parent=55 // pred_check_branch
        %2153 = sbr.rel (%p2151) target = $region60
      $region59: #{simple_depth_net.1} parent=55 // pred_region
        %p2154 = scmp.lt.s32.totalorder %s21, 1
        %s2155 = scalar_select %p2154, %s21, 1
        %s2156 = smul.addr %s2155, 3
        %s2157 = scalar_lea.vmem %s7, %s2156
      $region60: #{simple_depth_net.1} parent=55 // pred_fallthru
        _
    $region56: #{simple_depth_net.1} parent=5 // pred_fallthru
      _
  $region6: #{simple_depth_net.1} parent=0 // loop_footer
    %s19 = sadd.s32 1, %s15
  $region7: #{simple_depth_net.1} parent=0 // loop_footer_branch
    %14 = sbr.rel target = $region3
  $region8: #{simple_depth_net.1} parent=0 // loop_exit
    _

</llo_original>
